<compile_context>
chip_gen: v6e
topology: v6e:2x2x1
jax: 0.10.0
libtpu: 0.0.40
codegen_flags: <defaults>
</compile_context>

<pallas_src>
import functools

import jax
import jax.numpy as jnp
from jax import lax
from jax.experimental import pallas as pl
from jax.experimental.pallas import tpu as pltpu


# ---------------------------------------------------------------------------
# Fused kernel: stem1 + maxpool + stem2a + stem2b + stem3 (transposed layout)
# ---------------------------------------------------------------------------

def _stem_block_kernel(xct_ref, nr0_ref, nc0_ref,
                       w1t_ref, b1_ref, w2at_ref, b2a_ref,
                       w2bt_ref, b2b_ref, w3at_ref, w3bt_ref, b3_ref,
                       o_ref, *, W2):
    # Layout: channels on sublanes, M = Bt*H2*W2 pixels on lanes.
    #   xct_ref : (1, 4, 9*Cin, M)  transposed stem1 im2col, one slab per
    #                               2x2 phase of the stem1 output grid
    #   nr0/nc0 : (1, M) f32        0.0 where output row / col == 0, else 1.0
    #   w1t     : (C1, 9*Cin)   b1  : (C1, 1)
    #   w2at    : (Cs, C1)      b2a : (Cs, 1)
    #   w2bt    : (9, C1, Cs)   b2b : (C1, 1)   one (C1,Cs) slab per 3x3 tap
    #   w3at/bt : (C1, C1)      b3  : (C1, 1)
    #   o_ref   : (1, C1, M)
    _, _, K1, M = xct_ref.shape
    C1 = w1t_ref.shape[0]
    Cs = w2at_ref.shape[0]
    cdt = w1t_ref.dtype                      # matmul operand dtype (f32/bf16)

    w1t = w1t_ref[...]
    w2at = w2at_ref[...]
    b1 = b1_ref[...]
    b2a = b2a_ref[...]
    nr0 = nr0_ref[...]
    nc0 = nc0_ref[...]

    # --- stem1 (3x3/s2/p1) + maxpool + stem2a (1x1), per 2x2 output phase.
    #     Phase p = 2*py+px holds stem1 pixels (2i+py, 2j+px); the 2x2/s2
    #     maxpool is then just an elementwise max over the four phase maps.
    pooled = None
    a = []                                    # stem2a output per phase (f32)
    for p in range(4):
        t = jnp.dot(w1t, xct_ref[0, p], preferred_element_type=jnp.float32)
        t = jnp.maximum(t + b1, 0.0)                          # (C1, M) f32
        pooled = t if p == 0 else jnp.maximum(pooled, t)
        av = jnp.dot(w2at, t.astype(cdt), preferred_element_type=jnp.float32)
        a.append(jnp.maximum(av + b2a, 0.0))                  # (Cs, M) f32

    # --- stem2b (3x3/s2/p1): 9 accumulating matmuls over shifted phase maps.
    #     Output pixel (i,j) reads stem2a at (2i+dy-1, 2j+dx-1); in phase
    #     coordinates that is phase (par[dy], par[dx]) at (i+sh[dy], j+sh[dx]).
    #     A (di,dj) shift on the row-major flattened lane axis is a zero
    #     prepend of -(di*W2+dj) lanes; i==0 / j==0 boundary lanes are zeroed
    #     with the precomputed masks (valid across folded-batch boundaries).
    par = (1, 0, 1)
    sh = (-1, 0, 0)
    acc = jnp.zeros((C1, M), jnp.float32)
    for dy in range(3):
        pr, di = par[dy], sh[dy]
        for dx in range(3):
            pc, dj = par[dx], sh[dx]
            src = a[pr * 2 + pc]                              # (Cs, M)
            pad = -(di * W2 + dj)
            if pad:
                src = jnp.concatenate(
                    [jnp.zeros((Cs, pad), jnp.float32), src[:, :M - pad]],
                    axis=1)
            if di:
                src = src * nr0
            if dj:
                src = src * nc0
            acc = acc + jnp.dot(w2bt_ref[dy * 3 + dx], src.astype(cdt),
                                preferred_element_type=jnp.float32)
    y2b = jnp.maximum(acc + b2b_ref[...], 0.0)                # (C1, M) f32

    # --- stem3 (1x1) on cat([pooled, y2b], C) == split-weight matmuls.
    y3 = jnp.dot(w3at_ref[...], pooled.astype(cdt),
                 preferred_element_type=jnp.float32)
    y3 = y3 + jnp.dot(w3bt_ref[...], y2b.astype(cdt),
                      preferred_element_type=jnp.float32)
    y3 = jnp.maximum(y3 + b3_ref[...], 0.0)                   # (C1, M) f32

    o_ref[...] = y3.reshape(1, C1, M).astype(o_ref.dtype)


# ---------------------------------------------------------------------------
# Wrapper: weight folding/transposition, im2col, batch folding, pallas_call
# ---------------------------------------------------------------------------

def stem_block_forward(x, params, *, compute_dtype=jnp.bfloat16):
    """x: (N, H, W, Cin) NHWC -> (N, H//4, W//4, num_init_features) NHWC."""
    N, H, W, Cin = x.shape
    assert H % 4 == 0 and W % 4 == 0, "spatial dims must be divisible by 4"
    H2, W2 = H // 4, W // 4
    P = H2 * W2

    p1, p2a, p2b, p3 = (params["stem1"], params["stem2a"],
                        params["stem2b"], params["stem3"])
    C1 = p1["w"].shape[-1]       # num_init_features
    Cs = p2a["w"].shape[-1]      # num_stem_features
    K1 = 9 * Cin

    # Fold the BN (eval) scale into the conv weights, then transpose for the
    # channels-on-sublanes / pixels-on-lanes compute layout.
    w1t = (p1["w"] * p1["scale"]).reshape(K1, C1).T            # (C1, K1)
    w2at = (p2a["w"] * p2a["scale"]).T                          # (Cs, C1)
    w2bt = jnp.transpose(p2b["w"] * p2b["scale"],
                         (0, 1, 3, 2)).reshape(9, C1, Cs)       # per-tap slabs
    w3 = p3["w"] * p3["scale"]                                  # (2*C1, C1)
    w3at, w3bt = w3[:C1].T, w3[C1:].T                           # [pooled|branch2]
    b1 = p1["bias"].reshape(C1, 1)
    b2a = p2a["bias"].reshape(Cs, 1)
    b2b = p2b["bias"].reshape(C1, 1)
    b3 = p3["bias"].reshape(C1, 1)
    w1t, w2at, w2bt, w3at, w3bt = (w.astype(compute_dtype)
                                   for w in (w1t, w2at, w2bt, w3at, w3bt))

    # Fold several batch samples into one grid step when P is small so the
    # lane axis is >= 128 wide and the per-grid-step overhead is amortised.
    Bt = 1
    if P < 512:
        for cand in range(min(N, max(1, 512 // P)), 0, -1):
            if N % cand == 0:
                Bt = cand
                break
    G = N // Bt
    M = Bt * P

    # Transposed im2col for stem1 (3x3/s2/p1), phase-major:
    #   x_colT[n, 2*py+px, 3*dy*Cin.., i*W2+j] = xpad[n, 4i+2py+dy, 4j+2px+dx, c]
    xp = jnp.pad(x, ((0, 0), (1, 1), (1, 1), (0, 0)))
    phases = []
    for py in range(2):
        for px in range(2):
            taps = []
            for dy in range(3):
                for dx in range(3):
                    r0, c0 = 2 * py + dy, 2 * px + dx
                    taps.append(xp[:, r0:r0 + 4 * (H2 - 1) + 1:4,
                                   c0:c0 + 4 * (W2 - 1) + 1:4, :])
            cat = jnp.concatenate(taps, axis=-1)               # (N,H2,W2,K1)
            phases.append(cat.transpose(0, 3, 1, 2).reshape(N, K1, P))
    x_colT = jnp.stack(phases, axis=1)                         # (N,4,K1,P)
    x_colT = (x_colT.reshape(G, Bt, 4, K1, P)
              .transpose(0, 2, 3, 1, 4)
              .reshape(G, 4, K1, M)
              .astype(compute_dtype))

    # Boundary masks on the flattened lane axis (0.0 where out row/col == 0).
    lane = jnp.arange(M, dtype=jnp.int32) % P
    nr0 = ((lane // W2) > 0).astype(jnp.float32).reshape(1, M)
    nc0 = ((lane % W2) > 0).astype(jnp.float32).reshape(1, M)

    def full(shape):
        return pl.BlockSpec(shape, lambda g, _n=len(shape): (0,) * _n)

    # Advisory cost estimate + VMEM budgeting (only raise the limit above the
    # 32 MiB default when a big working set actually needs it, e.g. detection
    # resolutions on v7x's 64 MiB VMEM / v5e's small default scoped limit).
    item = jnp.dtype(compute_dtype).itemsize
    flops = 2 * N * P * (4 * C1 * K1 + 4 * Cs * C1 + 9 * C1 * Cs + 2 * C1 * C1)
    bytes_accessed = (N * 4 * K1 * P * item + N * P * C1 * 4
                      + (C1 * K1 + Cs * C1 + 9 * C1 * Cs + 2 * C1 * C1) * item)
    est_vmem = (2 * (4 * K1 * M * item + C1 * M * 4)          # pipelined blocks
                + (4 * Cs + 3 * C1) * M * 4                   # live activations
                + (1 << 20))
    cp_kwargs = {}
    if est_vmem > 32 * 1024 * 1024:
        cp_kwargs["vmem_limit_bytes"] = int(min(2 * est_vmem,
                                                100 * 1024 * 1024))

    out = pl.pallas_call(
        functools.partial(_stem_block_kernel, W2=W2),
        out_shape=jax.ShapeDtypeStruct((G, C1, M), x.dtype),
        grid=(G,),
        in_specs=[
            pl.BlockSpec((1, 4, K1, M), lambda g: (g, 0, 0, 0)),
            full((1, M)), full((1, M)),
            full((C1, K1)), full((C1, 1)),
            full((Cs, C1)), full((Cs, 1)),
            full((9, C1, Cs)), full((C1, 1)),
            full((C1, C1)), full((C1, C1)), full((C1, 1)),
        ],
        out_specs=pl.BlockSpec((1, C1, M), lambda g: (g, 0, 0)),
        compiler_params=pltpu.CompilerParams(
            dimension_semantics=("parallel",), **cp_kwargs),
        cost_estimate=pl.CostEstimate(flops=int(flops), transcendentals=0,
                                      bytes_accessed=int(bytes_accessed)),
    )(x_colT, nr0, nc0, w1t, b1, w2at, b2a, w2bt, b2b, w3at, w3bt, b3)

    # (G, C1, Bt*H2*W2) -> (N, H2, W2, C1) NHWC.
    out = (out.reshape(G, C1, Bt, H2, W2)
           .transpose(0, 2, 3, 4, 1)
           .reshape(N, H2, W2, C1))
    return out


# ---------------------------------------------------------------------------
# Parameter construction (deterministic synthetic; BN in eval mode, folded)
# ---------------------------------------------------------------------------

def make_basic_conv_params(key, cin, cout, ksize, eps=1e-5):
    k1, k2, k3, k4, k5 = jax.random.split(key, 5)
    if ksize == 1:
        w = jax.random.normal(k1, (cin, cout), jnp.float32) * 0.1
    else:
        w = jax.random.normal(k1, (3, 3, cin, cout), jnp.float32) * 0.1
    gamma = jax.random.uniform(k2, (cout,), jnp.float32, 0.5, 1.5)
    beta = jax.random.normal(k3, (cout,), jnp.float32) * 0.1
    run_mean = jax.random.normal(k4, (cout,), jnp.float32) * 0.1
    run_var = jax.random.uniform(k5, (cout,), jnp.float32, 0.5, 1.5)
    scale = gamma / jnp.sqrt(run_var + eps)
    bias = beta - run_mean * scale
    return {"w": w, "scale": scale, "bias": bias, "ksize": ksize}


def make_stem_block_params(key, num_input_channels, num_init_features):
    num_stem = num_init_features // 2
    keys = jax.random.split(key, 4)
    return {
        "stem1": make_basic_conv_params(keys[0], num_input_channels,
                                        num_init_features, 3),
        "stem2a": make_basic_conv_params(keys[1], num_init_features,
                                         num_stem, 1),
        "stem2b": make_basic_conv_params(keys[2], num_stem,
                                         num_init_features, 3),
        "stem3": make_basic_conv_params(keys[3], 2 * num_init_features,
                                        num_init_features, 1),
    }


# ---------------------------------------------------------------------------
# Pure-JAX reference (for the correctness check)
# ---------------------------------------------------------------------------

def ref_basic_conv2d(x, p, stride):
    w = p["w"]
    if p["ksize"] == 1:
        w4 = w.reshape(1, 1, *w.shape)
        pad = ((0, 0), (0, 0))
    else:
        w4 = w
        pad = ((1, 1), (1, 1))
    y = lax.conv_general_dilated(
        x, w4, window_strides=(stride, stride), padding=pad,
        dimension_numbers=("NHWC", "HWIO", "NHWC"))
    return jnp.maximum(y * p["scale"] + p["bias"], 0.0)


def ref_stem_block_forward(x, params):
    t1 = ref_basic_conv2d(x, params["stem1"], stride=2)
    branch1 = lax.reduce_window(t1, -jnp.inf, lax.max,
                                (1, 2, 2, 1), (1, 2, 2, 1), "VALID")
    branch2 = ref_basic_conv2d(t1, params["stem2a"], stride=1)
    branch2 = ref_basic_conv2d(branch2, params["stem2b"], stride=2)
    cat = jnp.concatenate([branch1, branch2], axis=-1)
    return ref_basic_conv2d(cat, params["stem3"], stride=1)


# ---------------------------------------------------------------------------
if __name__ == "__main__":
    key = jax.random.PRNGKey(0)
    kx, kp = jax.random.split(key)

    # _StemBlock(num_input_channels=3, num_init_features=32), 32x32 input.
    N, H, W, Cin = 2, 32, 32, 3
    num_init_features = 32
    x = jax.random.normal(kx, (N, H, W, Cin), jnp.float32)
    params = make_stem_block_params(kp, Cin, num_init_features)

    ref = jax.block_until_ready(ref_stem_block_forward(x, params))

    # Full-precision matmul operands: tight check.
    out32 = jax.block_until_ready(
        stem_block_forward(x, params, compute_dtype=jnp.float32))
    assert out32.shape == (N, H // 4, W // 4, num_init_features), out32.shape
    err32 = float(jnp.max(jnp.abs(out32 - ref)))
    assert jnp.allclose(out32, ref, atol=1e-3, rtol=1e-3), err32

    # bf16 matmul operands (f32 accumulation / epilogues): looser tolerance.
    out16 = jax.block_until_ready(
        stem_block_forward(x, params, compute_dtype=jnp.bfloat16))
    err16 = float(jnp.max(jnp.abs(out16 - ref)))
    assert jnp.allclose(out16, ref, atol=5e-2, rtol=5e-2), err16

    print("KERNEL_OK")
</pallas_src>

<mosaic_0001>
module attributes {stable_mosaic.version = 11 : i64} {
  func.func @_stem_block_kernel(%arg0: i32, %arg1: memref<1x4x27x128xf32, #tpu.memory_space<vmem>>, %arg2: memref<1x128xf32, #tpu.memory_space<vmem>>, %arg3: memref<1x128xf32, #tpu.memory_space<vmem>>, %arg4: memref<32x27xf32, #tpu.memory_space<vmem>>, %arg5: memref<32x1xf32, #tpu.memory_space<vmem>>, %arg6: memref<16x32xf32, #tpu.memory_space<vmem>>, %arg7: memref<16x1xf32, #tpu.memory_space<vmem>>, %arg8: memref<9x32x16xf32, #tpu.memory_space<vmem>>, %arg9: memref<32x1xf32, #tpu.memory_space<vmem>>, %arg10: memref<32x32xf32, #tpu.memory_space<vmem>>, %arg11: memref<32x32xf32, #tpu.memory_space<vmem>>, %arg12: memref<32x1xf32, #tpu.memory_space<vmem>>, %arg13: memref<1x32x128xf32, #tpu.memory_space<vmem>>) attributes {dimension_semantics = [#tpu.dimension_semantics<parallel>], iteration_bounds = array<i64: 1>, scalar_prefetch = 0 : i64, scratch_operands = 0 : i64, tpu.core_type = #tpu.core_type<tc>, window_params = [{transform_indices = @transform_0, window_bounds = array<i64: 1, 4, 27, 128>}, {pipeline_mode = #tpu.pipeline_mode<synchronous>, transform_indices = @transform_1, window_bounds = array<i64: 1, 128>}, {pipeline_mode = #tpu.pipeline_mode<synchronous>, transform_indices = @transform_2, window_bounds = array<i64: 1, 128>}, {pipeline_mode = #tpu.pipeline_mode<synchronous>, transform_indices = @transform_3, window_bounds = array<i64: 32, 27>}, {pipeline_mode = #tpu.pipeline_mode<synchronous>, transform_indices = @transform_4, window_bounds = array<i64: 32, 1>}, {pipeline_mode = #tpu.pipeline_mode<synchronous>, transform_indices = @transform_5, window_bounds = array<i64: 16, 32>}, {pipeline_mode = #tpu.pipeline_mode<synchronous>, transform_indices = @transform_6, window_bounds = array<i64: 16, 1>}, {pipeline_mode = #tpu.pipeline_mode<synchronous>, transform_indices = @transform_7, window_bounds = array<i64: 9, 32, 16>}, {pipeline_mode = #tpu.pipeline_mode<synchronous>, transform_indices = @transform_8, window_bounds = array<i64: 32, 1>}, {pipeline_mode = #tpu.pipeline_mode<synchronous>, transform_indices = @transform_9, window_bounds = array<i64: 32, 32>}, {pipeline_mode = #tpu.pipeline_mode<synchronous>, transform_indices = @transform_10, window_bounds = array<i64: 32, 32>}, {pipeline_mode = #tpu.pipeline_mode<synchronous>, transform_indices = @transform_11, window_bounds = array<i64: 32, 1>}, {transform_indices = @transform_12, window_bounds = array<i64: 1, 32, 128>}]} {
    %c0 = arith.constant 0 : index
    %c0_0 = arith.constant 0 : index
    %0 = vector.load %arg4[%c0, %c0_0] : memref<32x27xf32, #tpu.memory_space<vmem>>, vector<32x27xf32>
    %c0_1 = arith.constant 0 : index
    %c0_2 = arith.constant 0 : index
    %1 = vector.load %arg6[%c0_1, %c0_2] : memref<16x32xf32, #tpu.memory_space<vmem>>, vector<16x32xf32>
    %c0_3 = arith.constant 0 : index
    %c0_4 = arith.constant 0 : index
    %2 = vector.load %arg5[%c0_3, %c0_4] : memref<32x1xf32, #tpu.memory_space<vmem>>, vector<32x1xf32>
    %c0_5 = arith.constant 0 : index
    %c0_6 = arith.constant 0 : index
    %3 = vector.load %arg7[%c0_5, %c0_6] : memref<16x1xf32, #tpu.memory_space<vmem>>, vector<16x1xf32>
    %c0_7 = arith.constant 0 : index
    %c0_8 = arith.constant 0 : index
    %4 = vector.load %arg2[%c0_7, %c0_8] : memref<1x128xf32, #tpu.memory_space<vmem>>, vector<1x128xf32>
    %c0_9 = arith.constant 0 : index
    %c0_10 = arith.constant 0 : index
    %5 = vector.load %arg3[%c0_9, %c0_10] : memref<1x128xf32, #tpu.memory_space<vmem>>, vector<1x128xf32>
    %c0_11 = arith.constant 0 : index
    %c0_12 = arith.constant 0 : index
    %c0_13 = arith.constant 0 : index
    %c0_14 = arith.constant 0 : index
    %6 = vector.load %arg1[%c0_11, %c0_12, %c0_13, %c0_14] : memref<1x4x27x128xf32, #tpu.memory_space<vmem>>, vector<1x1x27x128xf32>
    %7 = vector.shape_cast %6 : vector<1x1x27x128xf32> to vector<27x128xf32>
    %cst = arith.constant dense<0.000000e+00> : vector<32x128xf32>
    %8 = tpu.matmul %0, %7, %cst {dimension_numbers = #tpu.dot_dimension_numbers<[1], [0], [0], [1], [0, 0, 1, 1], [], []>} : vector<32x27xf32>, vector<27x128xf32>, vector<32x128xf32> -> vector<32x128xf32>
    %9 = vector.broadcast %2 : vector<32x1xf32> to vector<32x128xf32>
    %10 = arith.addf %8, %9 : vector<32x128xf32>
    %cst_15 = arith.constant 0.000000e+00 : f32
    %11 = vector.broadcast %cst_15 : f32 to vector<32x128xf32>
    %12 = arith.maximumf %10, %11 : vector<32x128xf32>
    %cst_16 = arith.constant dense<0.000000e+00> : vector<16x128xf32>
    %13 = tpu.matmul %1, %12, %cst_16 {dimension_numbers = #tpu.dot_dimension_numbers<[1], [0], [0], [1], [0, 0, 1, 1], [], []>} : vector<16x32xf32>, vector<32x128xf32>, vector<16x128xf32> -> vector<16x128xf32>
    %14 = vector.broadcast %3 : vector<16x1xf32> to vector<16x128xf32>
    %15 = arith.addf %13, %14 : vector<16x128xf32>
    %cst_17 = arith.constant 0.000000e+00 : f32
    %16 = vector.broadcast %cst_17 : f32 to vector<16x128xf32>
    %17 = arith.maximumf %15, %16 : vector<16x128xf32>
    %c0_18 = arith.constant 0 : index
    %c1 = arith.constant 1 : index
    %c0_19 = arith.constant 0 : index
    %c0_20 = arith.constant 0 : index
    %18 = vector.load %arg1[%c0_18, %c1, %c0_19, %c0_20] : memref<1x4x27x128xf32, #tpu.memory_space<vmem>>, vector<1x1x27x128xf32>
    %19 = vector.shape_cast %18 : vector<1x1x27x128xf32> to vector<27x128xf32>
    %cst_21 = arith.constant dense<0.000000e+00> : vector<32x128xf32>
    %20 = tpu.matmul %0, %19, %cst_21 {dimension_numbers = #tpu.dot_dimension_numbers<[1], [0], [0], [1], [0, 0, 1, 1], [], []>} : vector<32x27xf32>, vector<27x128xf32>, vector<32x128xf32> -> vector<32x128xf32>
    %21 = vector.broadcast %2 : vector<32x1xf32> to vector<32x128xf32>
    %22 = arith.addf %20, %21 : vector<32x128xf32>
    %cst_22 = arith.constant 0.000000e+00 : f32
    %23 = vector.broadcast %cst_22 : f32 to vector<32x128xf32>
    %24 = arith.maximumf %22, %23 : vector<32x128xf32>
    %25 = arith.maximumf %12, %24 : vector<32x128xf32>
    %cst_23 = arith.constant dense<0.000000e+00> : vector<16x128xf32>
    %26 = tpu.matmul %1, %24, %cst_23 {dimension_numbers = #tpu.dot_dimension_numbers<[1], [0], [0], [1], [0, 0, 1, 1], [], []>} : vector<16x32xf32>, vector<32x128xf32>, vector<16x128xf32> -> vector<16x128xf32>
    %27 = vector.broadcast %3 : vector<16x1xf32> to vector<16x128xf32>
    %28 = arith.addf %26, %27 : vector<16x128xf32>
    %cst_24 = arith.constant 0.000000e+00 : f32
    %29 = vector.broadcast %cst_24 : f32 to vector<16x128xf32>
    %30 = arith.maximumf %28, %29 : vector<16x128xf32>
    %c0_25 = arith.constant 0 : index
    %c2 = arith.constant 2 : index
    %c0_26 = arith.constant 0 : index
    %c0_27 = arith.constant 0 : index
    %31 = vector.load %arg1[%c0_25, %c2, %c0_26, %c0_27] : memref<1x4x27x128xf32, #tpu.memory_space<vmem>>, vector<1x1x27x128xf32>
    %32 = vector.shape_cast %31 : vector<1x1x27x128xf32> to vector<27x128xf32>
    %cst_28 = arith.constant dense<0.000000e+00> : vector<32x128xf32>
    %33 = tpu.matmul %0, %32, %cst_28 {dimension_numbers = #tpu.dot_dimension_numbers<[1], [0], [0], [1], [0, 0, 1, 1], [], []>} : vector<32x27xf32>, vector<27x128xf32>, vector<32x128xf32> -> vector<32x128xf32>
    %34 = vector.broadcast %2 : vector<32x1xf32> to vector<32x128xf32>
    %35 = arith.addf %33, %34 : vector<32x128xf32>
    %cst_29 = arith.constant 0.000000e+00 : f32
    %36 = vector.broadcast %cst_29 : f32 to vector<32x128xf32>
    %37 = arith.maximumf %35, %36 : vector<32x128xf32>
    %38 = arith.maximumf %25, %37 : vector<32x128xf32>
    %cst_30 = arith.constant dense<0.000000e+00> : vector<16x128xf32>
    %39 = tpu.matmul %1, %37, %cst_30 {dimension_numbers = #tpu.dot_dimension_numbers<[1], [0], [0], [1], [0, 0, 1, 1], [], []>} : vector<16x32xf32>, vector<32x128xf32>, vector<16x128xf32> -> vector<16x128xf32>
    %40 = vector.broadcast %3 : vector<16x1xf32> to vector<16x128xf32>
    %41 = arith.addf %39, %40 : vector<16x128xf32>
    %cst_31 = arith.constant 0.000000e+00 : f32
    %42 = vector.broadcast %cst_31 : f32 to vector<16x128xf32>
    %43 = arith.maximumf %41, %42 : vector<16x128xf32>
    %c0_32 = arith.constant 0 : index
    %c3 = arith.constant 3 : index
    %c0_33 = arith.constant 0 : index
    %c0_34 = arith.constant 0 : index
    %44 = vector.load %arg1[%c0_32, %c3, %c0_33, %c0_34] : memref<1x4x27x128xf32, #tpu.memory_space<vmem>>, vector<1x1x27x128xf32>
    %45 = vector.shape_cast %44 : vector<1x1x27x128xf32> to vector<27x128xf32>
    %cst_35 = arith.constant dense<0.000000e+00> : vector<32x128xf32>
    %46 = tpu.matmul %0, %45, %cst_35 {dimension_numbers = #tpu.dot_dimension_numbers<[1], [0], [0], [1], [0, 0, 1, 1], [], []>} : vector<32x27xf32>, vector<27x128xf32>, vector<32x128xf32> -> vector<32x128xf32>
    %47 = vector.broadcast %2 : vector<32x1xf32> to vector<32x128xf32>
    %48 = arith.addf %46, %47 : vector<32x128xf32>
    %cst_36 = arith.constant 0.000000e+00 : f32
    %49 = vector.broadcast %cst_36 : f32 to vector<32x128xf32>
    %50 = arith.maximumf %48, %49 : vector<32x128xf32>
    %51 = arith.maximumf %38, %50 : vector<32x128xf32>
    %cst_37 = arith.constant dense<0.000000e+00> : vector<16x128xf32>
    %52 = tpu.matmul %1, %50, %cst_37 {dimension_numbers = #tpu.dot_dimension_numbers<[1], [0], [0], [1], [0, 0, 1, 1], [], []>} : vector<16x32xf32>, vector<32x128xf32>, vector<16x128xf32> -> vector<16x128xf32>
    %53 = vector.broadcast %3 : vector<16x1xf32> to vector<16x128xf32>
    %54 = arith.addf %52, %53 : vector<16x128xf32>
    %cst_38 = arith.constant 0.000000e+00 : f32
    %55 = vector.broadcast %cst_38 : f32 to vector<16x128xf32>
    %56 = arith.maximumf %54, %55 : vector<16x128xf32>
    %cst_39 = arith.constant 0.000000e+00 : f32
    %57 = vector.broadcast %cst_39 : f32 to vector<32x128xf32>
    %cst_40 = arith.constant 0.000000e+00 : f32
    %58 = vector.broadcast %cst_40 : f32 to vector<16x9xf32>
    %59 = vector.extract_strided_slice %56 {offsets = [0, 0], sizes = [16, 119], strides = [1, 1]} : vector<16x128xf32> to vector<16x119xf32>
    %60 = tpu.concatenate %58, %59 in 1 : vector<16x9xf32>, vector<16x119xf32> -> vector<16x128xf32>
    %61 = vector.broadcast %4 : vector<1x128xf32> to vector<16x128xf32>
    %62 = arith.mulf %60, %61 : vector<16x128xf32>
    %63 = vector.broadcast %5 : vector<1x128xf32> to vector<16x128xf32>
    %64 = arith.mulf %62, %63 : vector<16x128xf32>
    %c0_41 = arith.constant 0 : index
    %c0_42 = arith.constant 0 : index
    %c0_43 = arith.constant 0 : index
    %65 = vector.load %arg8[%c0_41, %c0_42, %c0_43] : memref<9x32x16xf32, #tpu.memory_space<vmem>>, vector<1x32x16xf32>
    %66 = vector.shape_cast %65 : vector<1x32x16xf32> to vector<32x16xf32>
    %cst_44 = arith.constant dense<0.000000e+00> : vector<32x128xf32>
    %67 = tpu.matmul %66, %64, %cst_44 {dimension_numbers = #tpu.dot_dimension_numbers<[1], [0], [0], [1], [0, 0, 1, 1], [], []>} : vector<32x16xf32>, vector<16x128xf32>, vector<32x128xf32> -> vector<32x128xf32>
    %68 = arith.addf %57, %67 : vector<32x128xf32>
    %cst_45 = arith.constant 0.000000e+00 : f32
    %69 = vector.broadcast %cst_45 : f32 to vector<16x8xf32>
    %70 = vector.extract_strided_slice %43 {offsets = [0, 0], sizes = [16, 120], strides = [1, 1]} : vector<16x128xf32> to vector<16x120xf32>
    %71 = tpu.concatenate %69, %70 in 1 : vector<16x8xf32>, vector<16x120xf32> -> vector<16x128xf32>
    %72 = vector.broadcast %4 : vector<1x128xf32> to vector<16x128xf32>
    %73 = arith.mulf %71, %72 : vector<16x128xf32>
    %c1_46 = arith.constant 1 : index
    %c0_47 = arith.constant 0 : index
    %c0_48 = arith.constant 0 : index
    %74 = vector.load %arg8[%c1_46, %c0_47, %c0_48] : memref<9x32x16xf32, #tpu.memory_space<vmem>>, vector<1x32x16xf32>
    %75 = vector.shape_cast %74 : vector<1x32x16xf32> to vector<32x16xf32>
    %cst_49 = arith.constant dense<0.000000e+00> : vector<32x128xf32>
    %76 = tpu.matmul %75, %73, %cst_49 {dimension_numbers = #tpu.dot_dimension_numbers<[1], [0], [0], [1], [0, 0, 1, 1], [], []>} : vector<32x16xf32>, vector<16x128xf32>, vector<32x128xf32> -> vector<32x128xf32>
    %77 = arith.addf %68, %76 : vector<32x128xf32>
    %cst_50 = arith.constant 0.000000e+00 : f32
    %78 = vector.broadcast %cst_50 : f32 to vector<16x8xf32>
    %79 = vector.extract_strided_slice %56 {offsets = [0, 0], sizes = [16, 120], strides = [1, 1]} : vector<16x128xf32> to vector<16x120xf32>
    %80 = tpu.concatenate %78, %79 in 1 : vector<16x8xf32>, vector<16x120xf32> -> vector<16x128xf32>
    %81 = vector.broadcast %4 : vector<1x128xf32> to vector<16x128xf32>
    %82 = arith.mulf %80, %81 : vector<16x128xf32>
    %c2_51 = arith.constant 2 : index
    %c0_52 = arith.constant 0 : index
    %c0_53 = arith.constant 0 : index
    %83 = vector.load %arg8[%c2_51, %c0_52, %c0_53] : memref<9x32x16xf32, #tpu.memory_space<vmem>>, vector<1x32x16xf32>
    %84 = vector.shape_cast %83 : vector<1x32x16xf32> to vector<32x16xf32>
    %cst_54 = arith.constant dense<0.000000e+00> : vector<32x128xf32>
    %85 = tpu.matmul %84, %82, %cst_54 {dimension_numbers = #tpu.dot_dimension_numbers<[1], [0], [0], [1], [0, 0, 1, 1], [], []>} : vector<32x16xf32>, vector<16x128xf32>, vector<32x128xf32> -> vector<32x128xf32>
    %86 = arith.addf %77, %85 : vector<32x128xf32>
    %cst_55 = arith.constant 0.000000e+00 : f32
    %87 = vector.broadcast %cst_55 : f32 to vector<16x1xf32>
    %88 = vector.extract_strided_slice %30 {offsets = [0, 0], sizes = [16, 127], strides = [1, 1]} : vector<16x128xf32> to vector<16x127xf32>
    %89 = tpu.concatenate %87, %88 in 1 : vector<16x1xf32>, vector<16x127xf32> -> vector<16x128xf32>
    %90 = vector.broadcast %5 : vector<1x128xf32> to vector<16x128xf32>
    %91 = arith.mulf %89, %90 : vector<16x128xf32>
    %c3_56 = arith.constant 3 : index
    %c0_57 = arith.constant 0 : index
    %c0_58 = arith.constant 0 : index
    %92 = vector.load %arg8[%c3_56, %c0_57, %c0_58] : memref<9x32x16xf32, #tpu.memory_space<vmem>>, vector<1x32x16xf32>
    %93 = vector.shape_cast %92 : vector<1x32x16xf32> to vector<32x16xf32>
    %cst_59 = arith.constant dense<0.000000e+00> : vector<32x128xf32>
    %94 = tpu.matmul %93, %91, %cst_59 {dimension_numbers = #tpu.dot_dimension_numbers<[1], [0], [0], [1], [0, 0, 1, 1], [], []>} : vector<32x16xf32>, vector<16x128xf32>, vector<32x128xf32> -> vector<32x128xf32>
    %95 = arith.addf %86, %94 : vector<32x128xf32>
    %c4 = arith.constant 4 : index
    %c0_60 = arith.constant 0 : index
    %c0_61 = arith.constant 0 : index
    %96 = vector.load %arg8[%c4, %c0_60, %c0_61] : memref<9x32x16xf32, #tpu.memory_space<vmem>>, vector<1x32x16xf32>
    %97 = vector.shape_cast %96 : vector<1x32x16xf32> to vector<32x16xf32>
    %cst_62 = arith.constant dense<0.000000e+00> : vector<32x128xf32>
    %98 = tpu.matmul %97, %17, %cst_62 {dimension_numbers = #tpu.dot_dimension_numbers<[1], [0], [0], [1], [0, 0, 1, 1], [], []>} : vector<32x16xf32>, vector<16x128xf32>, vector<32x128xf32> -> vector<32x128xf32>
    %99 = arith.addf %95, %98 : vector<32x128xf32>
    %c5 = arith.constant 5 : index
    %c0_63 = arith.constant 0 : index
    %c0_64 = arith.constant 0 : index
    %100 = vector.load %arg8[%c5, %c0_63, %c0_64] : memref<9x32x16xf32, #tpu.memory_space<vmem>>, vector<1x32x16xf32>
    %101 = vector.shape_cast %100 : vector<1x32x16xf32> to vector<32x16xf32>
    %cst_65 = arith.constant dense<0.000000e+00> : vector<32x128xf32>
    %102 = tpu.matmul %101, %30, %cst_65 {dimension_numbers = #tpu.dot_dimension_numbers<[1], [0], [0], [1], [0, 0, 1, 1], [], []>} : vector<32x16xf32>, vector<16x128xf32>, vector<32x128xf32> -> vector<32x128xf32>
    %103 = arith.addf %99, %102 : vector<32x128xf32>
    %cst_66 = arith.constant 0.000000e+00 : f32
    %104 = vector.broadcast %cst_66 : f32 to vector<16x1xf32>
    %105 = vector.extract_strided_slice %56 {offsets = [0, 0], sizes = [16, 127], strides = [1, 1]} : vector<16x128xf32> to vector<16x127xf32>
    %106 = tpu.concatenate %104, %105 in 1 : vector<16x1xf32>, vector<16x127xf32> -> vector<16x128xf32>
    %107 = vector.broadcast %5 : vector<1x128xf32> to vector<16x128xf32>
    %108 = arith.mulf %106, %107 : vector<16x128xf32>
    %c6 = arith.constant 6 : index
    %c0_67 = arith.constant 0 : index
    %c0_68 = arith.constant 0 : index
    %109 = vector.load %arg8[%c6, %c0_67, %c0_68] : memref<9x32x16xf32, #tpu.memory_space<vmem>>, vector<1x32x16xf32>
    %110 = vector.shape_cast %109 : vector<1x32x16xf32> to vector<32x16xf32>
    %cst_69 = arith.constant dense<0.000000e+00> : vector<32x128xf32>
    %111 = tpu.matmul %110, %108, %cst_69 {dimension_numbers = #tpu.dot_dimension_numbers<[1], [0], [0], [1], [0, 0, 1, 1], [], []>} : vector<32x16xf32>, vector<16x128xf32>, vector<32x128xf32> -> vector<32x128xf32>
    %112 = arith.addf %103, %111 : vector<32x128xf32>
    %c7 = arith.constant 7 : index
    %c0_70 = arith.constant 0 : index
    %c0_71 = arith.constant 0 : index
    %113 = vector.load %arg8[%c7, %c0_70, %c0_71] : memref<9x32x16xf32, #tpu.memory_space<vmem>>, vector<1x32x16xf32>
    %114 = vector.shape_cast %113 : vector<1x32x16xf32> to vector<32x16xf32>
    %cst_72 = arith.constant dense<0.000000e+00> : vector<32x128xf32>
    %115 = tpu.matmul %114, %43, %cst_72 {dimension_numbers = #tpu.dot_dimension_numbers<[1], [0], [0], [1], [0, 0, 1, 1], [], []>} : vector<32x16xf32>, vector<16x128xf32>, vector<32x128xf32> -> vector<32x128xf32>
    %116 = arith.addf %112, %115 : vector<32x128xf32>
    %c8 = arith.constant 8 : index
    %c0_73 = arith.constant 0 : index
    %c0_74 = arith.constant 0 : index
    %117 = vector.load %arg8[%c8, %c0_73, %c0_74] : memref<9x32x16xf32, #tpu.memory_space<vmem>>, vector<1x32x16xf32>
    %118 = vector.shape_cast %117 : vector<1x32x16xf32> to vector<32x16xf32>
    %cst_75 = arith.constant dense<0.000000e+00> : vector<32x128xf32>
    %119 = tpu.matmul %118, %56, %cst_75 {dimension_numbers = #tpu.dot_dimension_numbers<[1], [0], [0], [1], [0, 0, 1, 1], [], []>} : vector<32x16xf32>, vector<16x128xf32>, vector<32x128xf32> -> vector<32x128xf32>
    %120 = arith.addf %116, %119 : vector<32x128xf32>
    %c0_76 = arith.constant 0 : index
    %c0_77 = arith.constant 0 : index
    %121 = vector.load %arg9[%c0_76, %c0_77] : memref<32x1xf32, #tpu.memory_space<vmem>>, vector<32x1xf32>
    %122 = vector.broadcast %121 : vector<32x1xf32> to vector<32x128xf32>
    %123 = arith.addf %120, %122 : vector<32x128xf32>
    %cst_78 = arith.constant 0.000000e+00 : f32
    %124 = vector.broadcast %cst_78 : f32 to vector<32x128xf32>
    %125 = arith.maximumf %123, %124 : vector<32x128xf32>
    %c0_79 = arith.constant 0 : index
    %c0_80 = arith.constant 0 : index
    %126 = vector.load %arg10[%c0_79, %c0_80] : memref<32x32xf32, #tpu.memory_space<vmem>>, vector<32x32xf32>
    %cst_81 = arith.constant dense<0.000000e+00> : vector<32x128xf32>
    %127 = tpu.matmul %126, %51, %cst_81 {dimension_numbers = #tpu.dot_dimension_numbers<[1], [0], [0], [1], [0, 0, 1, 1], [], []>} : vector<32x32xf32>, vector<32x128xf32>, vector<32x128xf32> -> vector<32x128xf32>
    %c0_82 = arith.constant 0 : index
    %c0_83 = arith.constant 0 : index
    %128 = vector.load %arg11[%c0_82, %c0_83] : memref<32x32xf32, #tpu.memory_space<vmem>>, vector<32x32xf32>
    %cst_84 = arith.constant dense<0.000000e+00> : vector<32x128xf32>
    %129 = tpu.matmul %128, %125, %cst_84 {dimension_numbers = #tpu.dot_dimension_numbers<[1], [0], [0], [1], [0, 0, 1, 1], [], []>} : vector<32x32xf32>, vector<32x128xf32>, vector<32x128xf32> -> vector<32x128xf32>
    %130 = arith.addf %127, %129 : vector<32x128xf32>
    %c0_85 = arith.constant 0 : index
    %c0_86 = arith.constant 0 : index
    %131 = vector.load %arg12[%c0_85, %c0_86] : memref<32x1xf32, #tpu.memory_space<vmem>>, vector<32x1xf32>
    %132 = vector.broadcast %131 : vector<32x1xf32> to vector<32x128xf32>
    %133 = arith.addf %130, %132 : vector<32x128xf32>
    %cst_87 = arith.constant 0.000000e+00 : f32
    %134 = vector.broadcast %cst_87 : f32 to vector<32x128xf32>
    %135 = arith.maximumf %133, %134 : vector<32x128xf32>
    %136 = vector.shape_cast %135 : vector<32x128xf32> to vector<1x32x128xf32>
    %c0_88 = arith.constant 0 : index
    %c0_89 = arith.constant 0 : index
    %c0_90 = arith.constant 0 : index
    %137 = vector.load %arg13[%c0_88, %c0_89, %c0_90] : memref<1x32x128xf32, #tpu.memory_space<vmem>>, vector<1x32x128xf32>
    tpu.vector_store %arg13[%c0_88, %c0_89, %c0_90], %136 {strides = array<i32>} : memref<1x32x128xf32, #tpu.memory_space<vmem>>, vector<1x32x128xf32>,
    return
  }
  func.func @transform_0(%arg0: i32) -> (i32, i32, i32, i32) {
    %c0_i32 = arith.constant 0 : i32
    %c0_i32_0 = arith.constant 0 : i32
    %c0_i32_1 = arith.constant 0 : i32
    %c0_i32_2 = arith.constant 0 : i32
    return %arg0, %c0_i32, %c0_i32_0, %c0_i32_1 : i32, i32, i32, i32
  }
  func.func @transform_1(%arg0: i32) -> (i32, i32) {
    %c0_i32 = arith.constant 0 : i32
    %c0_i32_0 = arith.constant 0 : i32
    %c0_i32_1 = arith.constant 0 : i32
    return %c0_i32, %c0_i32_0 : i32, i32
  }
  func.func @transform_2(%arg0: i32) -> (i32, i32) {
    %c0_i32 = arith.constant 0 : i32
    %c0_i32_0 = arith.constant 0 : i32
    %c0_i32_1 = arith.constant 0 : i32
    return %c0_i32, %c0_i32_0 : i32, i32
  }
  func.func @transform_3(%arg0: i32) -> (i32, i32) {
    %c0_i32 = arith.constant 0 : i32
    %c0_i32_0 = arith.constant 0 : i32
    %c0_i32_1 = arith.constant 0 : i32
    return %c0_i32, %c0_i32_0 : i32, i32
  }
  func.func @transform_4(%arg0: i32) -> (i32, i32) {
    %c0_i32 = arith.constant 0 : i32
    %c0_i32_0 = arith.constant 0 : i32
    %c0_i32_1 = arith.constant 0 : i32
    return %c0_i32, %c0_i32_0 : i32, i32
  }
  func.func @transform_5(%arg0: i32) -> (i32, i32) {
    %c0_i32 = arith.constant 0 : i32
    %c0_i32_0 = arith.constant 0 : i32
    %c0_i32_1 = arith.constant 0 : i32
    return %c0_i32, %c0_i32_0 : i32, i32
  }
  func.func @transform_6(%arg0: i32) -> (i32, i32) {
    %c0_i32 = arith.constant 0 : i32
    %c0_i32_0 = arith.constant 0 : i32
    %c0_i32_1 = arith.constant 0 : i32
    return %c0_i32, %c0_i32_0 : i32, i32
  }
  func.func @transform_7(%arg0: i32) -> (i32, i32, i32) {
    %c0_i32 = arith.constant 0 : i32
    %c0_i32_0 = arith.constant 0 : i32
    %c0_i32_1 = arith.constant 0 : i32
    %c0_i32_2 = arith.constant 0 : i32
    return %c0_i32, %c0_i32_0, %c0_i32_1 : i32, i32, i32
  }
  func.func @transform_8(%arg0: i32) -> (i32, i32) {
    %c0_i32 = arith.constant 0 : i32
    %c0_i32_0 = arith.constant 0 : i32
    %c0_i32_1 = arith.constant 0 : i32
    return %c0_i32, %c0_i32_0 : i32, i32
  }
  func.func @transform_9(%arg0: i32) -> (i32, i32) {
    %c0_i32 = arith.constant 0 : i32
    %c0_i32_0 = arith.constant 0 : i32
    %c0_i32_1 = arith.constant 0 : i32
    return %c0_i32, %c0_i32_0 : i32, i32
  }
  func.func @transform_10(%arg0: i32) -> (i32, i32) {
    %c0_i32 = arith.constant 0 : i32
    %c0_i32_0 = arith.constant 0 : i32
    %c0_i32_1 = arith.constant 0 : i32
    return %c0_i32, %c0_i32_0 : i32, i32
  }
  func.func @transform_11(%arg0: i32) -> (i32, i32) {
    %c0_i32 = arith.constant 0 : i32
    %c0_i32_0 = arith.constant 0 : i32
    %c0_i32_1 = arith.constant 0 : i32
    return %c0_i32, %c0_i32_0 : i32, i32
  }
  func.func @transform_12(%arg0: i32) -> (i32, i32, i32) {
    %c0_i32 = arith.constant 0 : i32
    %c0_i32_0 = arith.constant 0 : i32
    %c0_i32_1 = arith.constant 0 : i32
    return %arg0, %c0_i32, %c0_i32_0 : i32, i32, i32
  }
}

</mosaic_0001>

<llo_original>
// kernel: tpu_custom_call.1
$region0: #{tpu_custom_call.1}
  #allocation0 [shape = 'u32[]', space=smem, size = 0x4, offset = 0x4, fixed_abs, tag = 'smem constant byte address 0x4 - core index']
  #allocation1 [shape = 'u32[144,128]{1,0:T(1,128)}', space=vmem, size = 0x12000, scoped, tag = 'internal scratch']
  %s0 = inlined_call_operand.vmem [shape: f32[1,4,27,128], index: 0, kind: input, shape index: {}]
  %s1 = inlined_call_operand.vmem [shape: f32[1,128], index: 1, kind: input, shape index: {}]
  %s2 = inlined_call_operand.vmem [shape: f32[1,128], index: 2, kind: input, shape index: {}]
  %s3 = inlined_call_operand.vmem [shape: f32[32,27], index: 3, kind: input, shape index: {}]
  %s4 = inlined_call_operand.vmem [shape: f32[32,1], index: 4, kind: input, shape index: {}]
  %s5 = inlined_call_operand.vmem [shape: f32[16,32], index: 5, kind: input, shape index: {}]
  %s6 = inlined_call_operand.vmem [shape: f32[16,1], index: 6, kind: input, shape index: {}]
  %s7 = inlined_call_operand.vmem [shape: f32[9,32,16], index: 7, kind: input, shape index: {}]
  %s8 = inlined_call_operand.vmem [shape: f32[32,1], index: 8, kind: input, shape index: {}]
  %s9 = inlined_call_operand.vmem [shape: f32[32,32], index: 9, kind: input, shape index: {}]
  %s10 = inlined_call_operand.vmem [shape: f32[32,32], index: 10, kind: input, shape index: {}]
  %s11 = inlined_call_operand.vmem [shape: f32[32,1], index: 11, kind: input, shape index: {}]
  %s12 = inlined_call_operand.hbm [shape: f32[1,32,128], index: 12, kind: output, shape index: {}]
  %s13 = sld [smem:[#allocation0]]
  $region58: #{tpu_custom_call.1} parent=0
    _
  %s15 = ssub.s32 1, %s13
  %s16 = scalar_select 0, %s15, %s13
  $region1: #{tpu_custom_call.1} parent=0
    #allocation2 [shape = 'u8[16384]{0}', space=vmem, size = 0x4000, scoped, tag = 'output window, operand 0, single buffered']
    #allocation3 [shape = 's32[1]{0}', space=sflag, size = 0x4, scoped, tag = 'scoped memory for tpu_custom_call.1']
    %17 = vsyncpa [#allocation3], 0
    // Predicated region
    $region2: #{tpu_custom_call.1} parent=1 // pred_check
      _
    $region3: #{tpu_custom_call.1} parent=1 // pred_check_branch
      %19 = sbr.rel (0) target = $region5
    $region4: #{tpu_custom_call.1} parent=1 // pred_region
      _
    $region5: #{tpu_custom_call.1} parent=1 // pred_fallthru
      _
    // Predicated region
    $region6: #{tpu_custom_call.1} parent=1 // pred_check
      _
    $region7: #{tpu_custom_call.1} parent=1 // pred_check_branch
      %21 = sbr.rel (0) target = $region9
    $region8: #{tpu_custom_call.1} parent=1 // pred_region
      _
    $region9: #{tpu_custom_call.1} parent=1 // pred_fallthru
      _
    // Predicated region
    $region10: #{tpu_custom_call.1} parent=1 // pred_check
      _
    $region11: #{tpu_custom_call.1} parent=1 // pred_check_branch
      %23 = sbr.rel (0) target = $region13
    $region12: #{tpu_custom_call.1} parent=1 // pred_region
      _
    $region13: #{tpu_custom_call.1} parent=1 // pred_fallthru
      _
    // Predicated region
    $region14: #{tpu_custom_call.1} parent=1 // pred_check
      _
    $region15: #{tpu_custom_call.1} parent=1 // pred_check_branch
      %25 = sbr.rel (0) target = $region17
    $region16: #{tpu_custom_call.1} parent=1 // pred_region
      _
    $region17: #{tpu_custom_call.1} parent=1 // pred_fallthru
      _
    // Predicated region
    $region18: #{tpu_custom_call.1} parent=1 // pred_check
      _
    $region19: #{tpu_custom_call.1} parent=1 // pred_check_branch
      %27 = sbr.rel (0) target = $region21
    $region20: #{tpu_custom_call.1} parent=1 // pred_region
      _
    $region21: #{tpu_custom_call.1} parent=1 // pred_fallthru
      _
    // Predicated region
    $region22: #{tpu_custom_call.1} parent=1 // pred_check
      _
    $region23: #{tpu_custom_call.1} parent=1 // pred_check_branch
      %29 = sbr.rel (0) target = $region25
    $region24: #{tpu_custom_call.1} parent=1 // pred_region
      _
    $region25: #{tpu_custom_call.1} parent=1 // pred_fallthru
      _
    // Predicated region
    $region26: #{tpu_custom_call.1} parent=1 // pred_check
      _
    $region27: #{tpu_custom_call.1} parent=1 // pred_check_branch
      %31 = sbr.rel (0) target = $region29
    $region28: #{tpu_custom_call.1} parent=1 // pred_region
      _
    $region29: #{tpu_custom_call.1} parent=1 // pred_fallthru
      _
    // Predicated region
    $region30: #{tpu_custom_call.1} parent=1 // pred_check
      _
    $region31: #{tpu_custom_call.1} parent=1 // pred_check_branch
      %33 = sbr.rel (0) target = $region33
    $region32: #{tpu_custom_call.1} parent=1 // pred_region
      _
    $region33: #{tpu_custom_call.1} parent=1 // pred_fallthru
      _
    // Predicated region
    $region34: #{tpu_custom_call.1} parent=1 // pred_check
      _
    $region35: #{tpu_custom_call.1} parent=1 // pred_check_branch
      %35 = sbr.rel (0) target = $region37
    $region36: #{tpu_custom_call.1} parent=1 // pred_region
      _
    $region37: #{tpu_custom_call.1} parent=1 // pred_fallthru
      _
    // Predicated region
    $region38: #{tpu_custom_call.1} parent=1 // pred_check
      _
    $region39: #{tpu_custom_call.1} parent=1 // pred_check_branch
      %37 = sbr.rel (0) target = $region41
    $region40: #{tpu_custom_call.1} parent=1 // pred_region
      _
    $region41: #{tpu_custom_call.1} parent=1 // pred_fallthru
      _
    // Predicated region
    $region42: #{tpu_custom_call.1} parent=1 // pred_check
      _
    $region43: #{tpu_custom_call.1} parent=1 // pred_check_branch
      %39 = sbr.rel (0) target = $region45
    $region44: #{tpu_custom_call.1} parent=1 // pred_region
      _
    $region45: #{tpu_custom_call.1} parent=1 // pred_fallthru
      _
    // Predicated region
    $region46: #{tpu_custom_call.1} parent=1 // pred_check
      _
    $region47: #{tpu_custom_call.1} parent=1 // pred_check_branch
      %41 = sbr.rel (0) target = $region49
    $region48: #{tpu_custom_call.1} parent=1 // pred_region
      _
    $region49: #{tpu_custom_call.1} parent=1 // pred_fallthru
      _
    %v42 = vld [vmem:[%s3] sm:$0xff]
    %v43 = vld [vmem:[%s3 + $0x8] sm:$0xff]
    %v44 = vld [vmem:[%s3 + $0x10] sm:$0xff]
    %v45 = vld [vmem:[%s3 + $0x18] sm:$0xff]
    %v46 = vld [vmem:[%s5] sm:$0xff]
    %v47 = vld [vmem:[%s5 + $0x8] sm:$0xff]
    %v48 = vld [vmem:[%s4] sm:$0xff]
    %v49 = vld [vmem:[%s4 + $0x8] sm:$0xff]
    %v50 = vld [vmem:[%s4 + $0x10] sm:$0xff]
    %v51 = vld [vmem:[%s4 + $0x18] sm:$0xff]
    %v52 = vld [vmem:[%s6] sm:$0xff]
    %v53 = vld [vmem:[%s6 + $0x8] sm:$0xff]
    %v54 = vld [vmem:[%s1] sm:$0x1]
    %v55 = vld [vmem:[%s2] sm:$0x1]
    %v56 = vld [vmem:[%s0] sm:$0xff]
    %v57 = vld [vmem:[%s0 + $0x8] sm:$0xff]
    %v58 = vld [vmem:[%s0 + $0x10] sm:$0xff]
    %v59 = vld [vmem:[%s0 + $0x18] sm:$0x7]
    %61 = vset.pattern.permute.xlu0 0
    %62 = vperm.xlu0 %61, %v48
    %v63 = vpop.permute.xlu0 %62
    %66 = vset.pattern.permute.xlu0 0
    %67 = vperm.xlu0 %66, %v49
    %v68 = vpop.permute.xlu0 %67
    %71 = vset.pattern.permute.xlu0 0
    %72 = vperm.xlu0 %71, %v50
    %v73 = vpop.permute.xlu0 %72
    %76 = vset.pattern.permute.xlu0 0
    %77 = vperm.xlu0 %76, %v51
    %v78 = vpop.permute.xlu0 %77
    %vm80 = vcmask 220160
    %v82 = vsel %vm80, %v42, 0
    %v85 = vsel %vm80, %v43, 0
    %v88 = vsel %vm80, %v44, 0
    %v91 = vsel %vm80, %v45, 0
    %vm93 = vcmask 1042432
    %v95 = vsel %vm93, %v59, 0
    %97 = vmatprep.subr.mxu0 0.0
    %98 = vmatpush1.msra.mxu0 0.0
    %99 = vmatprep.subr.mxu0 0.0
    %100 = vmatpush1.msra.mxu0 0.0
    %101 = vmatprep.subr.mxu0 0.0
    %102 = vmatpush1.msra.mxu0 0.0
    %103 = vmatprep.subr.mxu0 0.0
    %104 = vmatpush1.msra.mxu0 0.0
    %105 = vmatprep.subr.mxu0 0.0
    %106 = vmatpush1.msra.mxu0 0.0
    %107 = vmatprep.subr.mxu0 0.0
    %108 = vmatpush1.msra.mxu0 0.0
    %109 = vmatprep.subr.mxu0 0.0
    %110 = vmatpush1.msra.mxu0 0.0
    %111 = vmatprep.subr.mxu0 0.0
    %112 = vmatpush1.msra.mxu0 0.0
    %113 = vmatprep.subr.mxu0 0.0
    %114 = vmatpush1.msra.mxu0 0.0
    %115 = vmatprep.subr.mxu0 0.0
    %116 = vmatpush1.msra.mxu0 0.0
    %117 = vmatprep.subr.mxu0 0.0
    %118 = vmatpush1.msra.mxu0 0.0
    %119 = vmatprep.subr.mxu0 0.0
    %120 = vmatpush1.msra.mxu0 0.0
    %121 = vmatprep.subr.mxu0 0.0
    %122 = vmatpush1.msra.mxu0 %v95
    %123 = vmatprep.subr.mxu0 0.0
    %124 = vmatpush1.msra.mxu0 %v58
    %125 = vmatprep.subr.mxu0 0.0
    %126 = vmatpush1.msra.mxu0 %v57
    %127 = vmatprep.subr.mxu0 0.0
    %128 = vmatpush1.msra.mxu0 %v56
    %129 = vmatprep.subr.mxu0 0.0
    %130 = vmatpush2.msra.mxu0 0.0
    %131 = vmatprep.subr.mxu0 0.0
    %132 = vmatpush2.msra.mxu0 0.0
    %133 = vmatprep.subr.mxu0 0.0
    %134 = vmatpush2.msra.mxu0 0.0
    %135 = vmatprep.subr.mxu0 0.0
    %136 = vmatpush2.msra.mxu0 0.0
    %137 = vmatprep.subr.mxu0 0.0
    %138 = vmatpush2.msra.mxu0 0.0
    %139 = vmatprep.subr.mxu0 0.0
    %140 = vmatpush2.msra.mxu0 0.0
    %141 = vmatprep.subr.mxu0 0.0
    %142 = vmatpush2.msra.mxu0 0.0
    %143 = vmatprep.subr.mxu0 0.0
    %144 = vmatpush2.msra.mxu0 0.0
    %145 = vmatprep.subr.mxu0 0.0
    %146 = vmatpush2.msra.mxu0 0.0
    %147 = vmatprep.subr.mxu0 0.0
    %148 = vmatpush2.msra.mxu0 0.0
    %149 = vmatprep.subr.mxu0 0.0
    %150 = vmatpush2.msra.mxu0 0.0
    %151 = vmatprep.subr.mxu0 0.0
    %152 = vmatpush2.msra.mxu0 0.0
    %153 = vmatprep.subr.mxu0 0.0
    %154 = vmatpush2.msra.mxu0 0.0
    %155 = vmatprep.subr.mxu0 0.0
    %156 = vmatpush2.msra.mxu0 0.0
    %157 = vmatprep.subr.mxu0 0.0
    %158 = vmatpush2.msra.mxu0 0.0
    %159 = vmatprep.subr.mxu0 0.0
    %160 = vmatpush2.msra.mxu0 0.0
    %161 = vmatprep.mubr.f32.mxu0 0.0
    %162 = vmatmul.mubr.f32.gmra.mxu0 %v82
    %v163 = vpop.f32.mrf.mxu0
    %v164 = vadd.f32 %v63, %v163
    %v165 = vpop.f32.mrf.mxu0
    %166 = vmatprep.mubr.f32.mxu0 0.0
    %167 = vmatmul.mubr.f32.gmra.mxu0 %v85
    %v168 = vpop.f32.mrf.mxu0
    %v169 = vadd.f32 %v68, %v168
    %v170 = vpop.f32.mrf.mxu0
    %171 = vmatprep.mubr.f32.mxu0 0.0
    %172 = vmatmul.mubr.f32.gmra.mxu0 %v88
    %v173 = vpop.f32.mrf.mxu0
    %v174 = vadd.f32 %v73, %v173
    %v175 = vpop.f32.mrf.mxu0
    %176 = vmatprep.mubr.f32.mxu0 0.0
    %177 = vmatmul.mubr.f32.gmra.mxu0 %v91
    %v178 = vpop.f32.mrf.mxu0
    %v179 = vadd.f32 %v78, %v178
    %v180 = vpop.f32.mrf.mxu0
    %181 = vdwg.mxu0
    %v182 = vmax.f32 %v164, 0.0
    %v183 = vmax.f32 %v169, 0.0
    %v184 = vmax.f32 %v174, 0.0
    %v185 = vmax.f32 %v179, 0.0
    %187 = vset.pattern.permute.xlu0 0
    %188 = vperm.xlu0 %187, %v52
    %v189 = vpop.permute.xlu0 %188
    %192 = vset.pattern.permute.xlu0 0
    %193 = vperm.xlu0 %192, %v53
    %v194 = vpop.permute.xlu0 %193
    %vm196 = vcmask 261120
    %v198 = vsel %vm196, %v46, 0
    %v201 = vsel %vm196, %v47, 0
    %203 = vmatprep.subr.mxu0 0.0
    %204 = vmatpush1.msra.mxu0 0.0
    %205 = vmatprep.subr.mxu0 0.0
    %206 = vmatpush1.msra.mxu0 0.0
    %207 = vmatprep.subr.mxu0 0.0
    %208 = vmatpush1.msra.mxu0 0.0
    %209 = vmatprep.subr.mxu0 0.0
    %210 = vmatpush1.msra.mxu0 0.0
    %211 = vmatprep.subr.mxu0 0.0
    %212 = vmatpush1.msra.mxu0 0.0
    %213 = vmatprep.subr.mxu0 0.0
    %214 = vmatpush1.msra.mxu0 0.0
    %215 = vmatprep.subr.mxu0 0.0
    %216 = vmatpush1.msra.mxu0 0.0
    %217 = vmatprep.subr.mxu0 0.0
    %218 = vmatpush1.msra.mxu0 0.0
    %219 = vmatprep.subr.mxu0 0.0
    %220 = vmatpush1.msra.mxu0 0.0
    %221 = vmatprep.subr.mxu0 0.0
    %222 = vmatpush1.msra.mxu0 0.0
    %223 = vmatprep.subr.mxu0 0.0
    %224 = vmatpush1.msra.mxu0 0.0
    %225 = vmatprep.subr.mxu0 0.0
    %226 = vmatpush1.msra.mxu0 0.0
    %227 = vmatprep.subr.mxu0 0.0
    %228 = vmatpush1.msra.mxu0 %v185
    %229 = vmatprep.subr.mxu0 0.0
    %230 = vmatpush1.msra.mxu0 %v184
    %231 = vmatprep.subr.mxu0 0.0
    %232 = vmatpush1.msra.mxu0 %v183
    %233 = vmatprep.subr.mxu0 0.0
    %234 = vmatpush1.msra.mxu0 %v182
    %235 = vmatprep.subr.mxu0 0.0
    %236 = vmatpush2.msra.mxu0 0.0
    %237 = vmatprep.subr.mxu0 0.0
    %238 = vmatpush2.msra.mxu0 0.0
    %239 = vmatprep.subr.mxu0 0.0
    %240 = vmatpush2.msra.mxu0 0.0
    %241 = vmatprep.subr.mxu0 0.0
    %242 = vmatpush2.msra.mxu0 0.0
    %243 = vmatprep.subr.mxu0 0.0
    %244 = vmatpush2.msra.mxu0 0.0
    %245 = vmatprep.subr.mxu0 0.0
    %246 = vmatpush2.msra.mxu0 0.0
    %247 = vmatprep.subr.mxu0 0.0
    %248 = vmatpush2.msra.mxu0 0.0
    %249 = vmatprep.subr.mxu0 0.0
    %250 = vmatpush2.msra.mxu0 0.0
    %251 = vmatprep.subr.mxu0 0.0
    %252 = vmatpush2.msra.mxu0 0.0
    %253 = vmatprep.subr.mxu0 0.0
    %254 = vmatpush2.msra.mxu0 0.0
    %255 = vmatprep.subr.mxu0 0.0
    %256 = vmatpush2.msra.mxu0 0.0
    %257 = vmatprep.subr.mxu0 0.0
    %258 = vmatpush2.msra.mxu0 0.0
    %259 = vmatprep.subr.mxu0 0.0
    %260 = vmatpush2.msra.mxu0 0.0
    %261 = vmatprep.subr.mxu0 0.0
    %262 = vmatpush2.msra.mxu0 0.0
    %263 = vmatprep.subr.mxu0 0.0
    %264 = vmatpush2.msra.mxu0 0.0
    %265 = vmatprep.subr.mxu0 0.0
    %266 = vmatpush2.msra.mxu0 0.0
    %267 = vmatprep.mubr.f32.mxu0 0.0
    %268 = vmatmul.mubr.f32.gmra.mxu0 %v198
    %v269 = vpop.f32.mrf.mxu0
    %v270 = vadd.f32 %v189, %v269
    %v271 = vpop.f32.mrf.mxu0
    %272 = vmatprep.mubr.f32.mxu0 0.0
    %273 = vmatmul.mubr.f32.gmra.mxu0 %v201
    %v274 = vpop.f32.mrf.mxu0
    %v275 = vadd.f32 %v194, %v274
    %v276 = vpop.f32.mrf.mxu0
    %277 = vdwg.mxu0
    %v278 = vmax.f32 %v270, 0.0
    %v279 = vmax.f32 %v275, 0.0
    %s280 = scalar_lea.vmem %s0, 32
    %v281 = vld [vmem:[%s280] sm:$0xff]
    %v282 = vld [vmem:[%s280 + $0x8] sm:$0xff]
    %v283 = vld [vmem:[%s280 + $0x10] sm:$0xff]
    %v284 = vld [vmem:[%s280 + $0x18] sm:$0x7]
    %v286 = vsel %vm93, %v284, 0
    %288 = vmatprep.subr.mxu0 0.0
    %289 = vmatpush1.msra.mxu0 0.0
    %290 = vmatprep.subr.mxu0 0.0
    %291 = vmatpush1.msra.mxu0 0.0
    %292 = vmatprep.subr.mxu0 0.0
    %293 = vmatpush1.msra.mxu0 0.0
    %294 = vmatprep.subr.mxu0 0.0
    %295 = vmatpush1.msra.mxu0 0.0
    %296 = vmatprep.subr.mxu0 0.0
    %297 = vmatpush1.msra.mxu0 0.0
    %298 = vmatprep.subr.mxu0 0.0
    %299 = vmatpush1.msra.mxu0 0.0
    %300 = vmatprep.subr.mxu0 0.0
    %301 = vmatpush1.msra.mxu0 0.0
    %302 = vmatprep.subr.mxu0 0.0
    %303 = vmatpush1.msra.mxu0 0.0
    %304 = vmatprep.subr.mxu0 0.0
    %305 = vmatpush1.msra.mxu0 0.0
    %306 = vmatprep.subr.mxu0 0.0
    %307 = vmatpush1.msra.mxu0 0.0
    %308 = vmatprep.subr.mxu0 0.0
    %309 = vmatpush1.msra.mxu0 0.0
    %310 = vmatprep.subr.mxu0 0.0
    %311 = vmatpush1.msra.mxu0 0.0
    %312 = vmatprep.subr.mxu0 0.0
    %313 = vmatpush1.msra.mxu0 %v286
    %314 = vmatprep.subr.mxu0 0.0
    %315 = vmatpush1.msra.mxu0 %v283
    %316 = vmatprep.subr.mxu0 0.0
    %317 = vmatpush1.msra.mxu0 %v282
    %318 = vmatprep.subr.mxu0 0.0
    %319 = vmatpush1.msra.mxu0 %v281
    %320 = vmatprep.subr.mxu0 0.0
    %321 = vmatpush2.msra.mxu0 0.0
    %322 = vmatprep.subr.mxu0 0.0
    %323 = vmatpush2.msra.mxu0 0.0
    %324 = vmatprep.subr.mxu0 0.0
    %325 = vmatpush2.msra.mxu0 0.0
    %326 = vmatprep.subr.mxu0 0.0
    %327 = vmatpush2.msra.mxu0 0.0
    %328 = vmatprep.subr.mxu0 0.0
    %329 = vmatpush2.msra.mxu0 0.0
    %330 = vmatprep.subr.mxu0 0.0
    %331 = vmatpush2.msra.mxu0 0.0
    %332 = vmatprep.subr.mxu0 0.0
    %333 = vmatpush2.msra.mxu0 0.0
    %334 = vmatprep.subr.mxu0 0.0
    %335 = vmatpush2.msra.mxu0 0.0
    %336 = vmatprep.subr.mxu0 0.0
    %337 = vmatpush2.msra.mxu0 0.0
    %338 = vmatprep.subr.mxu0 0.0
    %339 = vmatpush2.msra.mxu0 0.0
    %340 = vmatprep.subr.mxu0 0.0
    %341 = vmatpush2.msra.mxu0 0.0
    %342 = vmatprep.subr.mxu0 0.0
    %343 = vmatpush2.msra.mxu0 0.0
    %344 = vmatprep.subr.mxu0 0.0
    %345 = vmatpush2.msra.mxu0 0.0
    %346 = vmatprep.subr.mxu0 0.0
    %347 = vmatpush2.msra.mxu0 0.0
    %348 = vmatprep.subr.mxu0 0.0
    %349 = vmatpush2.msra.mxu0 0.0
    %350 = vmatprep.subr.mxu0 0.0
    %351 = vmatpush2.msra.mxu0 0.0
    %352 = vmatprep.mubr.f32.mxu0 0.0
    %353 = vmatmul.mubr.f32.gmra.mxu0 %v82
    %v354 = vpop.f32.mrf.mxu0
    %v355 = vadd.f32 %v63, %v354
    %v356 = vpop.f32.mrf.mxu0
    %357 = vmatprep.mubr.f32.mxu0 0.0
    %358 = vmatmul.mubr.f32.gmra.mxu0 %v85
    %v359 = vpop.f32.mrf.mxu0
    %v360 = vadd.f32 %v68, %v359
    %v361 = vpop.f32.mrf.mxu0
    %362 = vmatprep.mubr.f32.mxu0 0.0
    %363 = vmatmul.mubr.f32.gmra.mxu0 %v88
    %v364 = vpop.f32.mrf.mxu0
    %v365 = vadd.f32 %v73, %v364
    %v366 = vpop.f32.mrf.mxu0
    %367 = vmatprep.mubr.f32.mxu0 0.0
    %368 = vmatmul.mubr.f32.gmra.mxu0 %v91
    %v369 = vpop.f32.mrf.mxu0
    %v370 = vadd.f32 %v78, %v369
    %v371 = vpop.f32.mrf.mxu0
    %372 = vdwg.mxu0
    %v373 = vmax.f32 %v355, 0.0
    %v374 = vmax.f32 %v360, 0.0
    %v375 = vmax.f32 %v365, 0.0
    %v376 = vmax.f32 %v370, 0.0
    %v377 = vmax.f32 %v182, %v373
    %v378 = vmax.f32 %v183, %v374
    %v379 = vmax.f32 %v184, %v375
    %v380 = vmax.f32 %v185, %v376
    %381 = vmatprep.subr.mxu0 0.0
    %382 = vmatpush1.msra.mxu0 0.0
    %383 = vmatprep.subr.mxu0 0.0
    %384 = vmatpush1.msra.mxu0 0.0
    %385 = vmatprep.subr.mxu0 0.0
    %386 = vmatpush1.msra.mxu0 0.0
    %387 = vmatprep.subr.mxu0 0.0
    %388 = vmatpush1.msra.mxu0 0.0
    %389 = vmatprep.subr.mxu0 0.0
    %390 = vmatpush1.msra.mxu0 0.0
    %391 = vmatprep.subr.mxu0 0.0
    %392 = vmatpush1.msra.mxu0 0.0
    %393 = vmatprep.subr.mxu0 0.0
    %394 = vmatpush1.msra.mxu0 0.0
    %395 = vmatprep.subr.mxu0 0.0
    %396 = vmatpush1.msra.mxu0 0.0
    %397 = vmatprep.subr.mxu0 0.0
    %398 = vmatpush1.msra.mxu0 0.0
    %399 = vmatprep.subr.mxu0 0.0
    %400 = vmatpush1.msra.mxu0 0.0
    %401 = vmatprep.subr.mxu0 0.0
    %402 = vmatpush1.msra.mxu0 0.0
    %403 = vmatprep.subr.mxu0 0.0
    %404 = vmatpush1.msra.mxu0 0.0
    %405 = vmatprep.subr.mxu0 0.0
    %406 = vmatpush1.msra.mxu0 %v376
    %407 = vmatprep.subr.mxu0 0.0
    %408 = vmatpush1.msra.mxu0 %v375
    %409 = vmatprep.subr.mxu0 0.0
    %410 = vmatpush1.msra.mxu0 %v374
    %411 = vmatprep.subr.mxu0 0.0
    %412 = vmatpush1.msra.mxu0 %v373
    %413 = vmatprep.subr.mxu0 0.0
    %414 = vmatpush2.msra.mxu0 0.0
    %415 = vmatprep.subr.mxu0 0.0
    %416 = vmatpush2.msra.mxu0 0.0
    %417 = vmatprep.subr.mxu0 0.0
    %418 = vmatpush2.msra.mxu0 0.0
    %419 = vmatprep.subr.mxu0 0.0
    %420 = vmatpush2.msra.mxu0 0.0
    %421 = vmatprep.subr.mxu0 0.0
    %422 = vmatpush2.msra.mxu0 0.0
    %423 = vmatprep.subr.mxu0 0.0
    %424 = vmatpush2.msra.mxu0 0.0
    %425 = vmatprep.subr.mxu0 0.0
    %426 = vmatpush2.msra.mxu0 0.0
    %427 = vmatprep.subr.mxu0 0.0
    %428 = vmatpush2.msra.mxu0 0.0
    %429 = vmatprep.subr.mxu0 0.0
    %430 = vmatpush2.msra.mxu0 0.0
    %431 = vmatprep.subr.mxu0 0.0
    %432 = vmatpush2.msra.mxu0 0.0
    %433 = vmatprep.subr.mxu0 0.0
    %434 = vmatpush2.msra.mxu0 0.0
    %435 = vmatprep.subr.mxu0 0.0
    %436 = vmatpush2.msra.mxu0 0.0
    %437 = vmatprep.subr.mxu0 0.0
    %438 = vmatpush2.msra.mxu0 0.0
    %439 = vmatprep.subr.mxu0 0.0
    %440 = vmatpush2.msra.mxu0 0.0
    %441 = vmatprep.subr.mxu0 0.0
    %442 = vmatpush2.msra.mxu0 0.0
    %443 = vmatprep.subr.mxu0 0.0
    %444 = vmatpush2.msra.mxu0 0.0
    %445 = vmatprep.mubr.f32.mxu0 0.0
    %446 = vmatmul.mubr.f32.gmra.mxu0 %v198
    %v447 = vpop.f32.mrf.mxu0
    %v448 = vadd.f32 %v189, %v447
    %v449 = vpop.f32.mrf.mxu0
    %450 = vmatprep.mubr.f32.mxu0 0.0
    %451 = vmatmul.mubr.f32.gmra.mxu0 %v201
    %v452 = vpop.f32.mrf.mxu0
    %v453 = vadd.f32 %v194, %v452
    %v454 = vpop.f32.mrf.mxu0
    %455 = vdwg.mxu0
    %v456 = vmax.f32 %v448, 0.0
    %v457 = vmax.f32 %v453, 0.0
    %s458 = scalar_lea.vmem %s0, 64
    %v459 = vld [vmem:[%s458] sm:$0xff]
    %v460 = vld [vmem:[%s458 + $0x8] sm:$0xff]
    %v461 = vld [vmem:[%s458 + $0x10] sm:$0xff]
    %v462 = vld [vmem:[%s458 + $0x18] sm:$0x7]
    %v464 = vsel %vm93, %v462, 0
    %466 = vmatprep.subr.mxu0 0.0
    %467 = vmatpush1.msra.mxu0 0.0
    %468 = vmatprep.subr.mxu0 0.0
    %469 = vmatpush1.msra.mxu0 0.0
    %470 = vmatprep.subr.mxu0 0.0
    %471 = vmatpush1.msra.mxu0 0.0
    %472 = vmatprep.subr.mxu0 0.0
    %473 = vmatpush1.msra.mxu0 0.0
    %474 = vmatprep.subr.mxu0 0.0
    %475 = vmatpush1.msra.mxu0 0.0
    %476 = vmatprep.subr.mxu0 0.0
    %477 = vmatpush1.msra.mxu0 0.0
    %478 = vmatprep.subr.mxu0 0.0
    %479 = vmatpush1.msra.mxu0 0.0
    %480 = vmatprep.subr.mxu0 0.0
    %481 = vmatpush1.msra.mxu0 0.0
    %482 = vmatprep.subr.mxu0 0.0
    %483 = vmatpush1.msra.mxu0 0.0
    %484 = vmatprep.subr.mxu0 0.0
    %485 = vmatpush1.msra.mxu0 0.0
    %486 = vmatprep.subr.mxu0 0.0
    %487 = vmatpush1.msra.mxu0 0.0
    %488 = vmatprep.subr.mxu0 0.0
    %489 = vmatpush1.msra.mxu0 0.0
    %490 = vmatprep.subr.mxu0 0.0
    %491 = vmatpush1.msra.mxu0 %v464
    %492 = vmatprep.subr.mxu0 0.0
    %493 = vmatpush1.msra.mxu0 %v461
    %494 = vmatprep.subr.mxu0 0.0
    %495 = vmatpush1.msra.mxu0 %v460
    %496 = vmatprep.subr.mxu0 0.0
    %497 = vmatpush1.msra.mxu0 %v459
    %498 = vmatprep.subr.mxu0 0.0
    %499 = vmatpush2.msra.mxu0 0.0
    %500 = vmatprep.subr.mxu0 0.0
    %501 = vmatpush2.msra.mxu0 0.0
    %502 = vmatprep.subr.mxu0 0.0
    %503 = vmatpush2.msra.mxu0 0.0
    %504 = vmatprep.subr.mxu0 0.0
    %505 = vmatpush2.msra.mxu0 0.0
    %506 = vmatprep.subr.mxu0 0.0
    %507 = vmatpush2.msra.mxu0 0.0
    %508 = vmatprep.subr.mxu0 0.0
    %509 = vmatpush2.msra.mxu0 0.0
    %510 = vmatprep.subr.mxu0 0.0
    %511 = vmatpush2.msra.mxu0 0.0
    %512 = vmatprep.subr.mxu0 0.0
    %513 = vmatpush2.msra.mxu0 0.0
    %514 = vmatprep.subr.mxu0 0.0
    %515 = vmatpush2.msra.mxu0 0.0
    %516 = vmatprep.subr.mxu0 0.0
    %517 = vmatpush2.msra.mxu0 0.0
    %518 = vmatprep.subr.mxu0 0.0
    %519 = vmatpush2.msra.mxu0 0.0
    %520 = vmatprep.subr.mxu0 0.0
    %521 = vmatpush2.msra.mxu0 0.0
    %522 = vmatprep.subr.mxu0 0.0
    %523 = vmatpush2.msra.mxu0 0.0
    %524 = vmatprep.subr.mxu0 0.0
    %525 = vmatpush2.msra.mxu0 0.0
    %526 = vmatprep.subr.mxu0 0.0
    %527 = vmatpush2.msra.mxu0 0.0
    %528 = vmatprep.subr.mxu0 0.0
    %529 = vmatpush2.msra.mxu0 0.0
    %530 = vmatprep.mubr.f32.mxu0 0.0
    %531 = vmatmul.mubr.f32.gmra.mxu0 %v82
    %v532 = vpop.f32.mrf.mxu0
    %v533 = vadd.f32 %v63, %v532
    %v534 = vpop.f32.mrf.mxu0
    %535 = vmatprep.mubr.f32.mxu0 0.0
    %536 = vmatmul.mubr.f32.gmra.mxu0 %v85
    %v537 = vpop.f32.mrf.mxu0
    %v538 = vadd.f32 %v68, %v537
    %v539 = vpop.f32.mrf.mxu0
    %540 = vmatprep.mubr.f32.mxu0 0.0
    %541 = vmatmul.mubr.f32.gmra.mxu0 %v88
    %v542 = vpop.f32.mrf.mxu0
    %v543 = vadd.f32 %v73, %v542
    %v544 = vpop.f32.mrf.mxu0
    %545 = vmatprep.mubr.f32.mxu0 0.0
    %546 = vmatmul.mubr.f32.gmra.mxu0 %v91
    %v547 = vpop.f32.mrf.mxu0
    %v548 = vadd.f32 %v78, %v547
    %v549 = vpop.f32.mrf.mxu0
    %550 = vdwg.mxu0
    %v551 = vmax.f32 %v533, 0.0
    %v552 = vmax.f32 %v538, 0.0
    %v553 = vmax.f32 %v543, 0.0
    %v554 = vmax.f32 %v548, 0.0
    %v555 = vmax.f32 %v377, %v551
    %v556 = vmax.f32 %v378, %v552
    %v557 = vmax.f32 %v379, %v553
    %v558 = vmax.f32 %v380, %v554
    %559 = vmatprep.subr.mxu0 0.0
    %560 = vmatpush1.msra.mxu0 0.0
    %561 = vmatprep.subr.mxu0 0.0
    %562 = vmatpush1.msra.mxu0 0.0
    %563 = vmatprep.subr.mxu0 0.0
    %564 = vmatpush1.msra.mxu0 0.0
    %565 = vmatprep.subr.mxu0 0.0
    %566 = vmatpush1.msra.mxu0 0.0
    %567 = vmatprep.subr.mxu0 0.0
    %568 = vmatpush1.msra.mxu0 0.0
    %569 = vmatprep.subr.mxu0 0.0
    %570 = vmatpush1.msra.mxu0 0.0
    %571 = vmatprep.subr.mxu0 0.0
    %572 = vmatpush1.msra.mxu0 0.0
    %573 = vmatprep.subr.mxu0 0.0
    %574 = vmatpush1.msra.mxu0 0.0
    %575 = vmatprep.subr.mxu0 0.0
    %576 = vmatpush1.msra.mxu0 0.0
    %577 = vmatprep.subr.mxu0 0.0
    %578 = vmatpush1.msra.mxu0 0.0
    %579 = vmatprep.subr.mxu0 0.0
    %580 = vmatpush1.msra.mxu0 0.0
    %581 = vmatprep.subr.mxu0 0.0
    %582 = vmatpush1.msra.mxu0 0.0
    %583 = vmatprep.subr.mxu0 0.0
    %584 = vmatpush1.msra.mxu0 %v554
    %585 = vmatprep.subr.mxu0 0.0
    %586 = vmatpush1.msra.mxu0 %v553
    %587 = vmatprep.subr.mxu0 0.0
    %588 = vmatpush1.msra.mxu0 %v552
    %589 = vmatprep.subr.mxu0 0.0
    %590 = vmatpush1.msra.mxu0 %v551
    %591 = vmatprep.subr.mxu0 0.0
    %592 = vmatpush2.msra.mxu0 0.0
    %593 = vmatprep.subr.mxu0 0.0
    %594 = vmatpush2.msra.mxu0 0.0
    %595 = vmatprep.subr.mxu0 0.0
    %596 = vmatpush2.msra.mxu0 0.0
    %597 = vmatprep.subr.mxu0 0.0
    %598 = vmatpush2.msra.mxu0 0.0
    %599 = vmatprep.subr.mxu0 0.0
    %600 = vmatpush2.msra.mxu0 0.0
    %601 = vmatprep.subr.mxu0 0.0
    %602 = vmatpush2.msra.mxu0 0.0
    %603 = vmatprep.subr.mxu0 0.0
    %604 = vmatpush2.msra.mxu0 0.0
    %605 = vmatprep.subr.mxu0 0.0
    %606 = vmatpush2.msra.mxu0 0.0
    %607 = vmatprep.subr.mxu0 0.0
    %608 = vmatpush2.msra.mxu0 0.0
    %609 = vmatprep.subr.mxu0 0.0
    %610 = vmatpush2.msra.mxu0 0.0
    %611 = vmatprep.subr.mxu0 0.0
    %612 = vmatpush2.msra.mxu0 0.0
    %613 = vmatprep.subr.mxu0 0.0
    %614 = vmatpush2.msra.mxu0 0.0
    %615 = vmatprep.subr.mxu0 0.0
    %616 = vmatpush2.msra.mxu0 0.0
    %617 = vmatprep.subr.mxu0 0.0
    %618 = vmatpush2.msra.mxu0 0.0
    %619 = vmatprep.subr.mxu0 0.0
    %620 = vmatpush2.msra.mxu0 0.0
    %621 = vmatprep.subr.mxu0 0.0
    %622 = vmatpush2.msra.mxu0 0.0
    %623 = vmatprep.mubr.f32.mxu0 0.0
    %624 = vmatmul.mubr.f32.gmra.mxu0 %v198
    %v625 = vpop.f32.mrf.mxu0
    %v626 = vadd.f32 %v189, %v625
    %v627 = vpop.f32.mrf.mxu0
    %628 = vmatprep.mubr.f32.mxu0 0.0
    %629 = vmatmul.mubr.f32.gmra.mxu0 %v201
    %v630 = vpop.f32.mrf.mxu0
    %v631 = vadd.f32 %v194, %v630
    %v632 = vpop.f32.mrf.mxu0
    %633 = vdwg.mxu0
    %v634 = vmax.f32 %v626, 0.0
    %v635 = vmax.f32 %v631, 0.0
    %s636 = scalar_lea.vmem %s0, 96
    %v637 = vld [vmem:[%s636] sm:$0xff]
    %v638 = vld [vmem:[%s636 + $0x8] sm:$0xff]
    %v639 = vld [vmem:[%s636 + $0x10] sm:$0xff]
    %v640 = vld [vmem:[%s636 + $0x18] sm:$0x7]
    %v642 = vsel %vm93, %v640, 0
    %644 = vmatprep.subr.mxu0 0.0
    %645 = vmatpush1.msra.mxu0 0.0
    %646 = vmatprep.subr.mxu0 0.0
    %647 = vmatpush1.msra.mxu0 0.0
    %648 = vmatprep.subr.mxu0 0.0
    %649 = vmatpush1.msra.mxu0 0.0
    %650 = vmatprep.subr.mxu0 0.0
    %651 = vmatpush1.msra.mxu0 0.0
    %652 = vmatprep.subr.mxu0 0.0
    %653 = vmatpush1.msra.mxu0 0.0
    %654 = vmatprep.subr.mxu0 0.0
    %655 = vmatpush1.msra.mxu0 0.0
    %656 = vmatprep.subr.mxu0 0.0
    %657 = vmatpush1.msra.mxu0 0.0
    %658 = vmatprep.subr.mxu0 0.0
    %659 = vmatpush1.msra.mxu0 0.0
    %660 = vmatprep.subr.mxu0 0.0
    %661 = vmatpush1.msra.mxu0 0.0
    %662 = vmatprep.subr.mxu0 0.0
    %663 = vmatpush1.msra.mxu0 0.0
    %664 = vmatprep.subr.mxu0 0.0
    %665 = vmatpush1.msra.mxu0 0.0
    %666 = vmatprep.subr.mxu0 0.0
    %667 = vmatpush1.msra.mxu0 0.0
    %668 = vmatprep.subr.mxu0 0.0
    %669 = vmatpush1.msra.mxu0 %v642
    %670 = vmatprep.subr.mxu0 0.0
    %671 = vmatpush1.msra.mxu0 %v639
    %672 = vmatprep.subr.mxu0 0.0
    %673 = vmatpush1.msra.mxu0 %v638
    %674 = vmatprep.subr.mxu0 0.0
    %675 = vmatpush1.msra.mxu0 %v637
    %676 = vmatprep.subr.mxu0 0.0
    %677 = vmatpush2.msra.mxu0 0.0
    %678 = vmatprep.subr.mxu0 0.0
    %679 = vmatpush2.msra.mxu0 0.0
    %680 = vmatprep.subr.mxu0 0.0
    %681 = vmatpush2.msra.mxu0 0.0
    %682 = vmatprep.subr.mxu0 0.0
    %683 = vmatpush2.msra.mxu0 0.0
    %684 = vmatprep.subr.mxu0 0.0
    %685 = vmatpush2.msra.mxu0 0.0
    %686 = vmatprep.subr.mxu0 0.0
    %687 = vmatpush2.msra.mxu0 0.0
    %688 = vmatprep.subr.mxu0 0.0
    %689 = vmatpush2.msra.mxu0 0.0
    %690 = vmatprep.subr.mxu0 0.0
    %691 = vmatpush2.msra.mxu0 0.0
    %692 = vmatprep.subr.mxu0 0.0
    %693 = vmatpush2.msra.mxu0 0.0
    %694 = vmatprep.subr.mxu0 0.0
    %695 = vmatpush2.msra.mxu0 0.0
    %696 = vmatprep.subr.mxu0 0.0
    %697 = vmatpush2.msra.mxu0 0.0
    %698 = vmatprep.subr.mxu0 0.0
    %699 = vmatpush2.msra.mxu0 0.0
    %700 = vmatprep.subr.mxu0 0.0
    %701 = vmatpush2.msra.mxu0 0.0
    %702 = vmatprep.subr.mxu0 0.0
    %703 = vmatpush2.msra.mxu0 0.0
    %704 = vmatprep.subr.mxu0 0.0
    %705 = vmatpush2.msra.mxu0 0.0
    %706 = vmatprep.subr.mxu0 0.0
    %707 = vmatpush2.msra.mxu0 0.0
    %708 = vmatprep.mubr.f32.mxu0 0.0
    %709 = vmatmul.mubr.f32.gmra.mxu0 %v82
    %v710 = vpop.f32.mrf.mxu0
    %v711 = vadd.f32 %v63, %v710
    %v712 = vpop.f32.mrf.mxu0
    %713 = vmatprep.mubr.f32.mxu0 0.0
    %714 = vmatmul.mubr.f32.gmra.mxu0 %v85
    %v715 = vpop.f32.mrf.mxu0
    %v716 = vadd.f32 %v68, %v715
    %v717 = vpop.f32.mrf.mxu0
    %718 = vmatprep.mubr.f32.mxu0 0.0
    %719 = vmatmul.mubr.f32.gmra.mxu0 %v88
    %v720 = vpop.f32.mrf.mxu0
    %v721 = vadd.f32 %v73, %v720
    %v722 = vpop.f32.mrf.mxu0
    %723 = vmatprep.mubr.f32.mxu0 0.0
    %724 = vmatmul.mubr.f32.gmra.mxu0 %v91
    %v725 = vpop.f32.mrf.mxu0
    %v726 = vadd.f32 %v78, %v725
    %v727 = vpop.f32.mrf.mxu0
    %728 = vdwg.mxu0
    %v729 = vmax.f32 %v711, 0.0
    %v730 = vmax.f32 %v716, 0.0
    %v731 = vmax.f32 %v721, 0.0
    %v732 = vmax.f32 %v726, 0.0
    %v733 = vmax.f32 %v555, %v729
    %v734 = vmax.f32 %v556, %v730
    %v735 = vmax.f32 %v557, %v731
    %v736 = vmax.f32 %v558, %v732
    %737 = vmatprep.subr.mxu0 0.0
    %738 = vmatpush1.msra.mxu0 0.0
    %739 = vmatprep.subr.mxu0 0.0
    %740 = vmatpush1.msra.mxu0 0.0
    %741 = vmatprep.subr.mxu0 0.0
    %742 = vmatpush1.msra.mxu0 0.0
    %743 = vmatprep.subr.mxu0 0.0
    %744 = vmatpush1.msra.mxu0 0.0
    %745 = vmatprep.subr.mxu0 0.0
    %746 = vmatpush1.msra.mxu0 0.0
    %747 = vmatprep.subr.mxu0 0.0
    %748 = vmatpush1.msra.mxu0 0.0
    %749 = vmatprep.subr.mxu0 0.0
    %750 = vmatpush1.msra.mxu0 0.0
    %751 = vmatprep.subr.mxu0 0.0
    %752 = vmatpush1.msra.mxu0 0.0
    %753 = vmatprep.subr.mxu0 0.0
    %754 = vmatpush1.msra.mxu0 0.0
    %755 = vmatprep.subr.mxu0 0.0
    %756 = vmatpush1.msra.mxu0 0.0
    %757 = vmatprep.subr.mxu0 0.0
    %758 = vmatpush1.msra.mxu0 0.0
    %759 = vmatprep.subr.mxu0 0.0
    %760 = vmatpush1.msra.mxu0 0.0
    %761 = vmatprep.subr.mxu0 0.0
    %762 = vmatpush1.msra.mxu0 %v732
    %763 = vmatprep.subr.mxu0 0.0
    %764 = vmatpush1.msra.mxu0 %v731
    %765 = vmatprep.subr.mxu0 0.0
    %766 = vmatpush1.msra.mxu0 %v730
    %767 = vmatprep.subr.mxu0 0.0
    %768 = vmatpush1.msra.mxu0 %v729
    %769 = vmatprep.subr.mxu0 0.0
    %770 = vmatpush2.msra.mxu0 0.0
    %771 = vmatprep.subr.mxu0 0.0
    %772 = vmatpush2.msra.mxu0 0.0
    %773 = vmatprep.subr.mxu0 0.0
    %774 = vmatpush2.msra.mxu0 0.0
    %775 = vmatprep.subr.mxu0 0.0
    %776 = vmatpush2.msra.mxu0 0.0
    %777 = vmatprep.subr.mxu0 0.0
    %778 = vmatpush2.msra.mxu0 0.0
    %779 = vmatprep.subr.mxu0 0.0
    %780 = vmatpush2.msra.mxu0 0.0
    %781 = vmatprep.subr.mxu0 0.0
    %782 = vmatpush2.msra.mxu0 0.0
    %783 = vmatprep.subr.mxu0 0.0
    %784 = vmatpush2.msra.mxu0 0.0
    %785 = vmatprep.subr.mxu0 0.0
    %786 = vmatpush2.msra.mxu0 0.0
    %787 = vmatprep.subr.mxu0 0.0
    %788 = vmatpush2.msra.mxu0 0.0
    %789 = vmatprep.subr.mxu0 0.0
    %790 = vmatpush2.msra.mxu0 0.0
    %791 = vmatprep.subr.mxu0 0.0
    %792 = vmatpush2.msra.mxu0 0.0
    %793 = vmatprep.subr.mxu0 0.0
    %794 = vmatpush2.msra.mxu0 0.0
    %795 = vmatprep.subr.mxu0 0.0
    %796 = vmatpush2.msra.mxu0 0.0
    %797 = vmatprep.subr.mxu0 0.0
    %798 = vmatpush2.msra.mxu0 0.0
    %799 = vmatprep.subr.mxu0 0.0
    %800 = vmatpush2.msra.mxu0 0.0
    %801 = vmatprep.mubr.f32.mxu0 0.0
    %802 = vmatmul.mubr.f32.gmra.mxu0 %v198
    %v803 = vpop.f32.mrf.mxu0
    %v804 = vadd.f32 %v189, %v803
    %v805 = vpop.f32.mrf.mxu0
    %806 = vmatprep.mubr.f32.mxu0 0.0
    %807 = vmatmul.mubr.f32.gmra.mxu0 %v201
    %v808 = vpop.f32.mrf.mxu0
    %v809 = vadd.f32 %v194, %v808
    %v810 = vpop.f32.mrf.mxu0
    %811 = vdwg.mxu0
    %v812 = vmax.f32 %v804, 0.0
    %v813 = vmax.f32 %v809, 0.0
    %816 = vrot.lane.b32.xlu0 %v812, 9
    %v817 = vpop.permute.xlu0 %816
    %818 = vrot.lane.b32.xlu0 %v813, 9
    %v819 = vpop.permute.xlu0 %818
    %vm822 = vcmask 72704
    %v823 = vsel %vm822, 0.0, %v817
    %v824 = vsel %vm822, 0.0, %v819
    %v826 = vlaneseq
    %v827 = vshrl.u32 %v826, 7
    %v828 = vsub.s32 0, %v827
    %v829 = vrot.slane %v54, %v828
    %v831 = vmul.f32 %v823, %v829
    %v832 = vmul.f32 %v824, %v829
    %v834 = vlaneseq
    %v835 = vshrl.u32 %v834, 7
    %v836 = vsub.s32 0, %v835
    %v837 = vrot.slane %v55, %v836
    %v839 = vmul.f32 %v831, %v837
    %v840 = vmul.f32 %v832, %v837
    %v841 = vld [vmem:[%s7] sm:$0xff]
    %v842 = vld [vmem:[%s7 + $0x8] sm:$0xff]
    %v843 = vld [vmem:[%s7 + $0x10] sm:$0xff]
    %v844 = vld [vmem:[%s7 + $0x18] sm:$0xff]
    %847 = vrot.lane.b32.xlu0 %v634, 8
    %v848 = vpop.permute.xlu0 %847
    %849 = vrot.lane.b32.xlu0 %v635, 8
    %v850 = vpop.permute.xlu0 %849
    %vm853 = vcmask 64512
    %v854 = vsel %vm853, 0.0, %v848
    %v855 = vsel %vm853, 0.0, %v850
    %v856 = vmul.f32 %v854, %v829
    %v857 = vmul.f32 %v855, %v829
    %s858 = scalar_lea.vmem %s7, 32
    %v859 = vld [vmem:[%s858] sm:$0xff]
    %v860 = vld [vmem:[%s858 + $0x8] sm:$0xff]
    %v861 = vld [vmem:[%s858 + $0x10] sm:$0xff]
    %v862 = vld [vmem:[%s858 + $0x18] sm:$0xff]
    %vm863 = vcmask 130048
    %v865 = vsel %vm863, %v859, 0
    %v868 = vsel %vm863, %v860, 0
    %v871 = vsel %vm863, %v861, 0
    %v874 = vsel %vm863, %v862, 0
    %876 = vmatprep.subr.mxu0 0.0
    %877 = vmatpush1.msra.mxu0 0.0
    %878 = vmatprep.subr.mxu0 0.0
    %879 = vmatpush1.msra.mxu0 0.0
    %880 = vmatprep.subr.mxu0 0.0
    %881 = vmatpush1.msra.mxu0 0.0
    %882 = vmatprep.subr.mxu0 0.0
    %883 = vmatpush1.msra.mxu0 0.0
    %884 = vmatprep.subr.mxu0 0.0
    %885 = vmatpush1.msra.mxu0 0.0
    %886 = vmatprep.subr.mxu0 0.0
    %887 = vmatpush1.msra.mxu0 0.0
    %888 = vmatprep.subr.mxu0 0.0
    %889 = vmatpush1.msra.mxu0 0.0
    %890 = vmatprep.subr.mxu0 0.0
    %891 = vmatpush1.msra.mxu0 0.0
    %892 = vmatprep.subr.mxu0 0.0
    %893 = vmatpush1.msra.mxu0 0.0
    %894 = vmatprep.subr.mxu0 0.0
    %895 = vmatpush1.msra.mxu0 0.0
    %896 = vmatprep.subr.mxu0 0.0
    %897 = vmatpush1.msra.mxu0 0.0
    %898 = vmatprep.subr.mxu0 0.0
    %899 = vmatpush1.msra.mxu0 0.0
    %900 = vmatprep.subr.mxu0 0.0
    %901 = vmatpush1.msra.mxu0 0.0
    %902 = vmatprep.subr.mxu0 0.0
    %903 = vmatpush1.msra.mxu0 0.0
    %904 = vmatprep.subr.mxu0 0.0
    %905 = vmatpush1.msra.mxu0 %v857
    %906 = vmatprep.subr.mxu0 0.0
    %907 = vmatpush1.msra.mxu0 %v856
    %908 = vmatprep.subr.mxu0 0.0
    %909 = vmatpush2.msra.mxu0 0.0
    %910 = vmatprep.subr.mxu0 0.0
    %911 = vmatpush2.msra.mxu0 0.0
    %912 = vmatprep.subr.mxu0 0.0
    %913 = vmatpush2.msra.mxu0 0.0
    %914 = vmatprep.subr.mxu0 0.0
    %915 = vmatpush2.msra.mxu0 0.0
    %916 = vmatprep.subr.mxu0 0.0
    %917 = vmatpush2.msra.mxu0 0.0
    %918 = vmatprep.subr.mxu0 0.0
    %919 = vmatpush2.msra.mxu0 0.0
    %920 = vmatprep.subr.mxu0 0.0
    %921 = vmatpush2.msra.mxu0 0.0
    %922 = vmatprep.subr.mxu0 0.0
    %923 = vmatpush2.msra.mxu0 0.0
    %924 = vmatprep.subr.mxu0 0.0
    %925 = vmatpush2.msra.mxu0 0.0
    %926 = vmatprep.subr.mxu0 0.0
    %927 = vmatpush2.msra.mxu0 0.0
    %928 = vmatprep.subr.mxu0 0.0
    %929 = vmatpush2.msra.mxu0 0.0
    %930 = vmatprep.subr.mxu0 0.0
    %931 = vmatpush2.msra.mxu0 0.0
    %932 = vmatprep.subr.mxu0 0.0
    %933 = vmatpush2.msra.mxu0 0.0
    %934 = vmatprep.subr.mxu0 0.0
    %935 = vmatpush2.msra.mxu0 0.0
    %936 = vmatprep.subr.mxu0 0.0
    %937 = vmatpush2.msra.mxu0 0.0
    %938 = vmatprep.subr.mxu0 0.0
    %939 = vmatpush2.msra.mxu0 0.0
    %940 = vmatprep.mubr.f32.mxu0 0.0
    %941 = vmatmul.mubr.f32.gmra.mxu0 %v865
    %v942 = vpop.f32.mrf.mxu0
    %v943 = vadd.f32 0.0, %v942
    %v944 = vpop.f32.mrf.mxu0
    %945 = vmatprep.mubr.f32.mxu0 0.0
    %946 = vmatmul.mubr.f32.gmra.mxu0 %v868
    %v947 = vpop.f32.mrf.mxu0
    %v948 = vadd.f32 0.0, %v947
    %v949 = vpop.f32.mrf.mxu0
    %950 = vmatprep.mubr.f32.mxu0 0.0
    %951 = vmatmul.mubr.f32.gmra.mxu0 %v871
    %v952 = vpop.f32.mrf.mxu0
    %v953 = vadd.f32 0.0, %v952
    %v954 = vpop.f32.mrf.mxu0
    %955 = vmatprep.mubr.f32.mxu0 0.0
    %956 = vmatmul.mubr.f32.gmra.mxu0 %v874
    %v957 = vpop.f32.mrf.mxu0
    %v958 = vadd.f32 0.0, %v957
    %v959 = vpop.f32.mrf.mxu0
    %960 = vdwg.mxu0
    %v962 = vsel %vm863, %v841, 0
    %v965 = vsel %vm863, %v842, 0
    %v968 = vsel %vm863, %v843, 0
    %v971 = vsel %vm863, %v844, 0
    %973 = vmatprep.subr.mxu0 0.0
    %974 = vmatpush1.msra.mxu0 0.0
    %975 = vmatprep.subr.mxu0 0.0
    %976 = vmatpush1.msra.mxu0 0.0
    %977 = vmatprep.subr.mxu0 0.0
    %978 = vmatpush1.msra.mxu0 0.0
    %979 = vmatprep.subr.mxu0 0.0
    %980 = vmatpush1.msra.mxu0 0.0
    %981 = vmatprep.subr.mxu0 0.0
    %982 = vmatpush1.msra.mxu0 0.0
    %983 = vmatprep.subr.mxu0 0.0
    %984 = vmatpush1.msra.mxu0 0.0
    %985 = vmatprep.subr.mxu0 0.0
    %986 = vmatpush1.msra.mxu0 0.0
    %987 = vmatprep.subr.mxu0 0.0
    %988 = vmatpush1.msra.mxu0 0.0
    %989 = vmatprep.subr.mxu0 0.0
    %990 = vmatpush1.msra.mxu0 0.0
    %991 = vmatprep.subr.mxu0 0.0
    %992 = vmatpush1.msra.mxu0 0.0
    %993 = vmatprep.subr.mxu0 0.0
    %994 = vmatpush1.msra.mxu0 0.0
    %995 = vmatprep.subr.mxu0 0.0
    %996 = vmatpush1.msra.mxu0 0.0
    %997 = vmatprep.subr.mxu0 0.0
    %998 = vmatpush1.msra.mxu0 0.0
    %999 = vmatprep.subr.mxu0 0.0
    %1000 = vmatpush1.msra.mxu0 0.0
    %1001 = vmatprep.subr.mxu0 0.0
    %1002 = vmatpush1.msra.mxu0 %v840
    %1003 = vmatprep.subr.mxu0 0.0
    %1004 = vmatpush1.msra.mxu0 %v839
    %1005 = vmatprep.subr.mxu0 0.0
    %1006 = vmatpush2.msra.mxu0 0.0
    %1007 = vmatprep.subr.mxu0 0.0
    %1008 = vmatpush2.msra.mxu0 0.0
    %1009 = vmatprep.subr.mxu0 0.0
    %1010 = vmatpush2.msra.mxu0 0.0
    %1011 = vmatprep.subr.mxu0 0.0
    %1012 = vmatpush2.msra.mxu0 0.0
    %1013 = vmatprep.subr.mxu0 0.0
    %1014 = vmatpush2.msra.mxu0 0.0
    %1015 = vmatprep.subr.mxu0 0.0
    %1016 = vmatpush2.msra.mxu0 0.0
    %1017 = vmatprep.subr.mxu0 0.0
    %1018 = vmatpush2.msra.mxu0 0.0
    %1019 = vmatprep.subr.mxu0 0.0
    %1020 = vmatpush2.msra.mxu0 0.0
    %1021 = vmatprep.subr.mxu0 0.0
    %1022 = vmatpush2.msra.mxu0 0.0
    %1023 = vmatprep.subr.mxu0 0.0
    %1024 = vmatpush2.msra.mxu0 0.0
    %1025 = vmatprep.subr.mxu0 0.0
    %1026 = vmatpush2.msra.mxu0 0.0
    %1027 = vmatprep.subr.mxu0 0.0
    %1028 = vmatpush2.msra.mxu0 0.0
    %1029 = vmatprep.subr.mxu0 0.0
    %1030 = vmatpush2.msra.mxu0 0.0
    %1031 = vmatprep.subr.mxu0 0.0
    %1032 = vmatpush2.msra.mxu0 0.0
    %1033 = vmatprep.subr.mxu0 0.0
    %1034 = vmatpush2.msra.mxu0 0.0
    %1035 = vmatprep.subr.mxu0 0.0
    %1036 = vmatpush2.msra.mxu0 0.0
    %1037 = vmatprep.mubr.f32.mxu0 0.0
    %1038 = vmatmul.mubr.f32.gmra.mxu0 %v962
    %v1039 = vpop.f32.mrf.mxu0
    %v1040 = vadd.f32 %v943, %v1039
    %v1041 = vpop.f32.mrf.mxu0
    %1042 = vmatprep.mubr.f32.mxu0 0.0
    %1043 = vmatmul.mubr.f32.gmra.mxu0 %v965
    %v1044 = vpop.f32.mrf.mxu0
    %v1045 = vadd.f32 %v948, %v1044
    %v1046 = vpop.f32.mrf.mxu0
    %1047 = vmatprep.mubr.f32.mxu0 0.0
    %1048 = vmatmul.mubr.f32.gmra.mxu0 %v968
    %v1049 = vpop.f32.mrf.mxu0
    %v1050 = vadd.f32 %v953, %v1049
    %v1051 = vpop.f32.mrf.mxu0
    %1052 = vmatprep.mubr.f32.mxu0 0.0
    %1053 = vmatmul.mubr.f32.gmra.mxu0 %v971
    %v1054 = vpop.f32.mrf.mxu0
    %v1055 = vadd.f32 %v958, %v1054
    %v1056 = vpop.f32.mrf.mxu0
    %1057 = vdwg.mxu0
    %1058 = vrot.lane.b32.xlu0 %v812, 8
    %v1059 = vpop.permute.xlu0 %1058
    %1060 = vrot.lane.b32.xlu0 %v813, 8
    %v1061 = vpop.permute.xlu0 %1060
    %v1064 = vsel %vm853, 0.0, %v1059
    %v1065 = vsel %vm853, 0.0, %v1061
    %v1066 = vmul.f32 %v1064, %v829
    %v1067 = vmul.f32 %v1065, %v829
    %s1068 = scalar_lea.vmem %s7, 64
    %v1069 = vld [vmem:[%s1068] sm:$0xff]
    %v1070 = vld [vmem:[%s1068 + $0x8] sm:$0xff]
    %v1071 = vld [vmem:[%s1068 + $0x10] sm:$0xff]
    %v1072 = vld [vmem:[%s1068 + $0x18] sm:$0xff]
    %v1074 = vsel %vm863, %v1069, 0
    %v1077 = vsel %vm863, %v1070, 0
    %v1080 = vsel %vm863, %v1071, 0
    %v1083 = vsel %vm863, %v1072, 0
    %1085 = vmatprep.subr.mxu0 0.0
    %1086 = vmatpush1.msra.mxu0 0.0
    %1087 = vmatprep.subr.mxu0 0.0
    %1088 = vmatpush1.msra.mxu0 0.0
    %1089 = vmatprep.subr.mxu0 0.0
    %1090 = vmatpush1.msra.mxu0 0.0
    %1091 = vmatprep.subr.mxu0 0.0
    %1092 = vmatpush1.msra.mxu0 0.0
    %1093 = vmatprep.subr.mxu0 0.0
    %1094 = vmatpush1.msra.mxu0 0.0
    %1095 = vmatprep.subr.mxu0 0.0
    %1096 = vmatpush1.msra.mxu0 0.0
    %1097 = vmatprep.subr.mxu0 0.0
    %1098 = vmatpush1.msra.mxu0 0.0
    %1099 = vmatprep.subr.mxu0 0.0
    %1100 = vmatpush1.msra.mxu0 0.0
    %1101 = vmatprep.subr.mxu0 0.0
    %1102 = vmatpush1.msra.mxu0 0.0
    %1103 = vmatprep.subr.mxu0 0.0
    %1104 = vmatpush1.msra.mxu0 0.0
    %1105 = vmatprep.subr.mxu0 0.0
    %1106 = vmatpush1.msra.mxu0 0.0
    %1107 = vmatprep.subr.mxu0 0.0
    %1108 = vmatpush1.msra.mxu0 0.0
    %1109 = vmatprep.subr.mxu0 0.0
    %1110 = vmatpush1.msra.mxu0 0.0
    %1111 = vmatprep.subr.mxu0 0.0
    %1112 = vmatpush1.msra.mxu0 0.0
    %1113 = vmatprep.subr.mxu0 0.0
    %1114 = vmatpush1.msra.mxu0 %v1067
    %1115 = vmatprep.subr.mxu0 0.0
    %1116 = vmatpush1.msra.mxu0 %v1066
    %1117 = vmatprep.subr.mxu0 0.0
    %1118 = vmatpush2.msra.mxu0 0.0
    %1119 = vmatprep.subr.mxu0 0.0
    %1120 = vmatpush2.msra.mxu0 0.0
    %1121 = vmatprep.subr.mxu0 0.0
    %1122 = vmatpush2.msra.mxu0 0.0
    %1123 = vmatprep.subr.mxu0 0.0
    %1124 = vmatpush2.msra.mxu0 0.0
    %1125 = vmatprep.subr.mxu0 0.0
    %1126 = vmatpush2.msra.mxu0 0.0
    %1127 = vmatprep.subr.mxu0 0.0
    %1128 = vmatpush2.msra.mxu0 0.0
    %1129 = vmatprep.subr.mxu0 0.0
    %1130 = vmatpush2.msra.mxu0 0.0
    %1131 = vmatprep.subr.mxu0 0.0
    %1132 = vmatpush2.msra.mxu0 0.0
    %1133 = vmatprep.subr.mxu0 0.0
    %1134 = vmatpush2.msra.mxu0 0.0
    %1135 = vmatprep.subr.mxu0 0.0
    %1136 = vmatpush2.msra.mxu0 0.0
    %1137 = vmatprep.subr.mxu0 0.0
    %1138 = vmatpush2.msra.mxu0 0.0
    %1139 = vmatprep.subr.mxu0 0.0
    %1140 = vmatpush2.msra.mxu0 0.0
    %1141 = vmatprep.subr.mxu0 0.0
    %1142 = vmatpush2.msra.mxu0 0.0
    %1143 = vmatprep.subr.mxu0 0.0
    %1144 = vmatpush2.msra.mxu0 0.0
    %1145 = vmatprep.subr.mxu0 0.0
    %1146 = vmatpush2.msra.mxu0 0.0
    %1147 = vmatprep.subr.mxu0 0.0
    %1148 = vmatpush2.msra.mxu0 0.0
    %1149 = vmatprep.mubr.f32.mxu0 0.0
    %1150 = vmatmul.mubr.f32.gmra.mxu0 %v1074
    %v1151 = vpop.f32.mrf.mxu0
    %v1152 = vadd.f32 0.0, %v1151
    %v1153 = vpop.f32.mrf.mxu0
    %1154 = vmatprep.mubr.f32.mxu0 0.0
    %1155 = vmatmul.mubr.f32.gmra.mxu0 %v1077
    %v1156 = vpop.f32.mrf.mxu0
    %v1157 = vadd.f32 0.0, %v1156
    %v1158 = vpop.f32.mrf.mxu0
    %1159 = vmatprep.mubr.f32.mxu0 0.0
    %1160 = vmatmul.mubr.f32.gmra.mxu0 %v1080
    %v1161 = vpop.f32.mrf.mxu0
    %v1162 = vadd.f32 0.0, %v1161
    %v1163 = vpop.f32.mrf.mxu0
    %1164 = vmatprep.mubr.f32.mxu0 0.0
    %1165 = vmatmul.mubr.f32.gmra.mxu0 %v1083
    %v1166 = vpop.f32.mrf.mxu0
    %v1167 = vadd.f32 0.0, %v1166
    %v1168 = vpop.f32.mrf.mxu0
    %1169 = vdwg.mxu0
    %v1170 = vadd.f32 %v1040, %v1152
    %v1171 = vadd.f32 %v1045, %v1157
    %v1172 = vadd.f32 %v1050, %v1162
    %v1173 = vadd.f32 %v1055, %v1167
    %1176 = vrot.lane.b32.xlu0 %v456, 1
    %v1177 = vpop.permute.xlu0 %1176
    %1178 = vrot.lane.b32.xlu0 %v457, 1
    %v1179 = vpop.permute.xlu0 %1178
    %vm1182 = vcmask 7168
    %v1183 = vsel %vm1182, 0.0, %v1177
    %v1184 = vsel %vm1182, 0.0, %v1179
    %v1185 = vmul.f32 %v1183, %v837
    %v1186 = vmul.f32 %v1184, %v837
    %s1187 = scalar_lea.vmem %s7, 96
    %v1188 = vld [vmem:[%s1187] sm:$0xff]
    %v1189 = vld [vmem:[%s1187 + $0x8] sm:$0xff]
    %v1190 = vld [vmem:[%s1187 + $0x10] sm:$0xff]
    %v1191 = vld [vmem:[%s1187 + $0x18] sm:$0xff]
    %v1193 = vsel %vm863, %v1188, 0
    %v1196 = vsel %vm863, %v1189, 0
    %v1199 = vsel %vm863, %v1190, 0
    %v1202 = vsel %vm863, %v1191, 0
    %1204 = vmatprep.subr.mxu0 0.0
    %1205 = vmatpush1.msra.mxu0 0.0
    %1206 = vmatprep.subr.mxu0 0.0
    %1207 = vmatpush1.msra.mxu0 0.0
    %1208 = vmatprep.subr.mxu0 0.0
    %1209 = vmatpush1.msra.mxu0 0.0
    %1210 = vmatprep.subr.mxu0 0.0
    %1211 = vmatpush1.msra.mxu0 0.0
    %1212 = vmatprep.subr.mxu0 0.0
    %1213 = vmatpush1.msra.mxu0 0.0
    %1214 = vmatprep.subr.mxu0 0.0
    %1215 = vmatpush1.msra.mxu0 0.0
    %1216 = vmatprep.subr.mxu0 0.0
    %1217 = vmatpush1.msra.mxu0 0.0
    %1218 = vmatprep.subr.mxu0 0.0
    %1219 = vmatpush1.msra.mxu0 0.0
    %1220 = vmatprep.subr.mxu0 0.0
    %1221 = vmatpush1.msra.mxu0 0.0
    %1222 = vmatprep.subr.mxu0 0.0
    %1223 = vmatpush1.msra.mxu0 0.0
    %1224 = vmatprep.subr.mxu0 0.0
    %1225 = vmatpush1.msra.mxu0 0.0
    %1226 = vmatprep.subr.mxu0 0.0
    %1227 = vmatpush1.msra.mxu0 0.0
    %1228 = vmatprep.subr.mxu0 0.0
    %1229 = vmatpush1.msra.mxu0 0.0
    %1230 = vmatprep.subr.mxu0 0.0
    %1231 = vmatpush1.msra.mxu0 0.0
    %1232 = vmatprep.subr.mxu0 0.0
    %1233 = vmatpush1.msra.mxu0 %v1186
    %1234 = vmatprep.subr.mxu0 0.0
    %1235 = vmatpush1.msra.mxu0 %v1185
    %1236 = vmatprep.subr.mxu0 0.0
    %1237 = vmatpush2.msra.mxu0 0.0
    %1238 = vmatprep.subr.mxu0 0.0
    %1239 = vmatpush2.msra.mxu0 0.0
    %1240 = vmatprep.subr.mxu0 0.0
    %1241 = vmatpush2.msra.mxu0 0.0
    %1242 = vmatprep.subr.mxu0 0.0
    %1243 = vmatpush2.msra.mxu0 0.0
    %1244 = vmatprep.subr.mxu0 0.0
    %1245 = vmatpush2.msra.mxu0 0.0
    %1246 = vmatprep.subr.mxu0 0.0
    %1247 = vmatpush2.msra.mxu0 0.0
    %1248 = vmatprep.subr.mxu0 0.0
    %1249 = vmatpush2.msra.mxu0 0.0
    %1250 = vmatprep.subr.mxu0 0.0
    %1251 = vmatpush2.msra.mxu0 0.0
    %1252 = vmatprep.subr.mxu0 0.0
    %1253 = vmatpush2.msra.mxu0 0.0
    %1254 = vmatprep.subr.mxu0 0.0
    %1255 = vmatpush2.msra.mxu0 0.0
    %1256 = vmatprep.subr.mxu0 0.0
    %1257 = vmatpush2.msra.mxu0 0.0
    %1258 = vmatprep.subr.mxu0 0.0
    %1259 = vmatpush2.msra.mxu0 0.0
    %1260 = vmatprep.subr.mxu0 0.0
    %1261 = vmatpush2.msra.mxu0 0.0
    %1262 = vmatprep.subr.mxu0 0.0
    %1263 = vmatpush2.msra.mxu0 0.0
    %1264 = vmatprep.subr.mxu0 0.0
    %1265 = vmatpush2.msra.mxu0 0.0
    %1266 = vmatprep.subr.mxu0 0.0
    %1267 = vmatpush2.msra.mxu0 0.0
    %1268 = vmatprep.mubr.f32.mxu0 0.0
    %1269 = vmatmul.mubr.f32.gmra.mxu0 %v1193
    %v1270 = vpop.f32.mrf.mxu0
    %v1271 = vadd.f32 0.0, %v1270
    %v1272 = vpop.f32.mrf.mxu0
    %1273 = vmatprep.mubr.f32.mxu0 0.0
    %1274 = vmatmul.mubr.f32.gmra.mxu0 %v1196
    %v1275 = vpop.f32.mrf.mxu0
    %v1276 = vadd.f32 0.0, %v1275
    %v1277 = vpop.f32.mrf.mxu0
    %1278 = vmatprep.mubr.f32.mxu0 0.0
    %1279 = vmatmul.mubr.f32.gmra.mxu0 %v1199
    %v1280 = vpop.f32.mrf.mxu0
    %v1281 = vadd.f32 0.0, %v1280
    %v1282 = vpop.f32.mrf.mxu0
    %1283 = vmatprep.mubr.f32.mxu0 0.0
    %1284 = vmatmul.mubr.f32.gmra.mxu0 %v1202
    %v1285 = vpop.f32.mrf.mxu0
    %v1286 = vadd.f32 0.0, %v1285
    %v1287 = vpop.f32.mrf.mxu0
    %1288 = vdwg.mxu0
    %v1289 = vadd.f32 %v1170, %v1271
    %v1290 = vadd.f32 %v1171, %v1276
    %v1291 = vadd.f32 %v1172, %v1281
    %v1292 = vadd.f32 %v1173, %v1286
    %s1293 = scalar_lea.vmem %s7, 128
    %v1294 = vld [vmem:[%s1293] sm:$0xff]
    %v1295 = vld [vmem:[%s1293 + $0x8] sm:$0xff]
    %v1296 = vld [vmem:[%s1293 + $0x10] sm:$0xff]
    %v1297 = vld [vmem:[%s1293 + $0x18] sm:$0xff]
    %v1299 = vsel %vm863, %v1294, 0
    %v1302 = vsel %vm863, %v1295, 0
    %v1305 = vsel %vm863, %v1296, 0
    %v1308 = vsel %vm863, %v1297, 0
    %1310 = vmatprep.subr.mxu0 0.0
    %1311 = vmatpush1.msra.mxu0 0.0
    %1312 = vmatprep.subr.mxu0 0.0
    %1313 = vmatpush1.msra.mxu0 0.0
    %1314 = vmatprep.subr.mxu0 0.0
    %1315 = vmatpush1.msra.mxu0 0.0
    %1316 = vmatprep.subr.mxu0 0.0
    %1317 = vmatpush1.msra.mxu0 0.0
    %1318 = vmatprep.subr.mxu0 0.0
    %1319 = vmatpush1.msra.mxu0 0.0
    %1320 = vmatprep.subr.mxu0 0.0
    %1321 = vmatpush1.msra.mxu0 0.0
    %1322 = vmatprep.subr.mxu0 0.0
    %1323 = vmatpush1.msra.mxu0 0.0
    %1324 = vmatprep.subr.mxu0 0.0
    %1325 = vmatpush1.msra.mxu0 0.0
    %1326 = vmatprep.subr.mxu0 0.0
    %1327 = vmatpush1.msra.mxu0 0.0
    %1328 = vmatprep.subr.mxu0 0.0
    %1329 = vmatpush1.msra.mxu0 0.0
    %1330 = vmatprep.subr.mxu0 0.0
    %1331 = vmatpush1.msra.mxu0 0.0
    %1332 = vmatprep.subr.mxu0 0.0
    %1333 = vmatpush1.msra.mxu0 0.0
    %1334 = vmatprep.subr.mxu0 0.0
    %1335 = vmatpush1.msra.mxu0 0.0
    %1336 = vmatprep.subr.mxu0 0.0
    %1337 = vmatpush1.msra.mxu0 0.0
    %1338 = vmatprep.subr.mxu0 0.0
    %1339 = vmatpush1.msra.mxu0 %v279
    %1340 = vmatprep.subr.mxu0 0.0
    %1341 = vmatpush1.msra.mxu0 %v278
    %1342 = vmatprep.subr.mxu0 0.0
    %1343 = vmatpush2.msra.mxu0 0.0
    %1344 = vmatprep.subr.mxu0 0.0
    %1345 = vmatpush2.msra.mxu0 0.0
    %1346 = vmatprep.subr.mxu0 0.0
    %1347 = vmatpush2.msra.mxu0 0.0
    %1348 = vmatprep.subr.mxu0 0.0
    %1349 = vmatpush2.msra.mxu0 0.0
    %1350 = vmatprep.subr.mxu0 0.0
    %1351 = vmatpush2.msra.mxu0 0.0
    %1352 = vmatprep.subr.mxu0 0.0
    %1353 = vmatpush2.msra.mxu0 0.0
    %1354 = vmatprep.subr.mxu0 0.0
    %1355 = vmatpush2.msra.mxu0 0.0
    %1356 = vmatprep.subr.mxu0 0.0
    %1357 = vmatpush2.msra.mxu0 0.0
    %1358 = vmatprep.subr.mxu0 0.0
    %1359 = vmatpush2.msra.mxu0 0.0
    %1360 = vmatprep.subr.mxu0 0.0
    %1361 = vmatpush2.msra.mxu0 0.0
    %1362 = vmatprep.subr.mxu0 0.0
    %1363 = vmatpush2.msra.mxu0 0.0
    %1364 = vmatprep.subr.mxu0 0.0
    %1365 = vmatpush2.msra.mxu0 0.0
    %1366 = vmatprep.subr.mxu0 0.0
    %1367 = vmatpush2.msra.mxu0 0.0
    %1368 = vmatprep.subr.mxu0 0.0
    %1369 = vmatpush2.msra.mxu0 0.0
    %1370 = vmatprep.subr.mxu0 0.0
    %1371 = vmatpush2.msra.mxu0 0.0
    %1372 = vmatprep.subr.mxu0 0.0
    %1373 = vmatpush2.msra.mxu0 0.0
    %1374 = vmatprep.mubr.f32.mxu0 0.0
    %1375 = vmatmul.mubr.f32.gmra.mxu0 %v1299
    %v1376 = vpop.f32.mrf.mxu0
    %v1377 = vadd.f32 0.0, %v1376
    %v1378 = vpop.f32.mrf.mxu0
    %1379 = vmatprep.mubr.f32.mxu0 0.0
    %1380 = vmatmul.mubr.f32.gmra.mxu0 %v1302
    %v1381 = vpop.f32.mrf.mxu0
    %v1382 = vadd.f32 0.0, %v1381
    %v1383 = vpop.f32.mrf.mxu0
    %1384 = vmatprep.mubr.f32.mxu0 0.0
    %1385 = vmatmul.mubr.f32.gmra.mxu0 %v1305
    %v1386 = vpop.f32.mrf.mxu0
    %v1387 = vadd.f32 0.0, %v1386
    %v1388 = vpop.f32.mrf.mxu0
    %1389 = vmatprep.mubr.f32.mxu0 0.0
    %1390 = vmatmul.mubr.f32.gmra.mxu0 %v1308
    %v1391 = vpop.f32.mrf.mxu0
    %v1392 = vadd.f32 0.0, %v1391
    %v1393 = vpop.f32.mrf.mxu0
    %1394 = vdwg.mxu0
    %v1395 = vadd.f32 %v1289, %v1377
    %v1396 = vadd.f32 %v1290, %v1382
    %v1397 = vadd.f32 %v1291, %v1387
    %v1398 = vadd.f32 %v1292, %v1392
    %s1399 = scalar_lea.vmem %s7, 160
    %v1400 = vld [vmem:[%s1399] sm:$0xff]
    %v1401 = vld [vmem:[%s1399 + $0x8] sm:$0xff]
    %v1402 = vld [vmem:[%s1399 + $0x10] sm:$0xff]
    %v1403 = vld [vmem:[%s1399 + $0x18] sm:$0xff]
    %v1405 = vsel %vm863, %v1400, 0
    %v1408 = vsel %vm863, %v1401, 0
    %v1411 = vsel %vm863, %v1402, 0
    %v1414 = vsel %vm863, %v1403, 0
    %1416 = vmatprep.subr.mxu0 0.0
    %1417 = vmatpush1.msra.mxu0 0.0
    %1418 = vmatprep.subr.mxu0 0.0
    %1419 = vmatpush1.msra.mxu0 0.0
    %1420 = vmatprep.subr.mxu0 0.0
    %1421 = vmatpush1.msra.mxu0 0.0
    %1422 = vmatprep.subr.mxu0 0.0
    %1423 = vmatpush1.msra.mxu0 0.0
    %1424 = vmatprep.subr.mxu0 0.0
    %1425 = vmatpush1.msra.mxu0 0.0
    %1426 = vmatprep.subr.mxu0 0.0
    %1427 = vmatpush1.msra.mxu0 0.0
    %1428 = vmatprep.subr.mxu0 0.0
    %1429 = vmatpush1.msra.mxu0 0.0
    %1430 = vmatprep.subr.mxu0 0.0
    %1431 = vmatpush1.msra.mxu0 0.0
    %1432 = vmatprep.subr.mxu0 0.0
    %1433 = vmatpush1.msra.mxu0 0.0
    %1434 = vmatprep.subr.mxu0 0.0
    %1435 = vmatpush1.msra.mxu0 0.0
    %1436 = vmatprep.subr.mxu0 0.0
    %1437 = vmatpush1.msra.mxu0 0.0
    %1438 = vmatprep.subr.mxu0 0.0
    %1439 = vmatpush1.msra.mxu0 0.0
    %1440 = vmatprep.subr.mxu0 0.0
    %1441 = vmatpush1.msra.mxu0 0.0
    %1442 = vmatprep.subr.mxu0 0.0
    %1443 = vmatpush1.msra.mxu0 0.0
    %1444 = vmatprep.subr.mxu0 0.0
    %1445 = vmatpush1.msra.mxu0 %v457
    %1446 = vmatprep.subr.mxu0 0.0
    %1447 = vmatpush1.msra.mxu0 %v456
    %1448 = vmatprep.subr.mxu0 0.0
    %1449 = vmatpush2.msra.mxu0 0.0
    %1450 = vmatprep.subr.mxu0 0.0
    %1451 = vmatpush2.msra.mxu0 0.0
    %1452 = vmatprep.subr.mxu0 0.0
    %1453 = vmatpush2.msra.mxu0 0.0
    %1454 = vmatprep.subr.mxu0 0.0
    %1455 = vmatpush2.msra.mxu0 0.0
    %1456 = vmatprep.subr.mxu0 0.0
    %1457 = vmatpush2.msra.mxu0 0.0
    %1458 = vmatprep.subr.mxu0 0.0
    %1459 = vmatpush2.msra.mxu0 0.0
    %1460 = vmatprep.subr.mxu0 0.0
    %1461 = vmatpush2.msra.mxu0 0.0
    %1462 = vmatprep.subr.mxu0 0.0
    %1463 = vmatpush2.msra.mxu0 0.0
    %1464 = vmatprep.subr.mxu0 0.0
    %1465 = vmatpush2.msra.mxu0 0.0
    %1466 = vmatprep.subr.mxu0 0.0
    %1467 = vmatpush2.msra.mxu0 0.0
    %1468 = vmatprep.subr.mxu0 0.0
    %1469 = vmatpush2.msra.mxu0 0.0
    %1470 = vmatprep.subr.mxu0 0.0
    %1471 = vmatpush2.msra.mxu0 0.0
    %1472 = vmatprep.subr.mxu0 0.0
    %1473 = vmatpush2.msra.mxu0 0.0
    %1474 = vmatprep.subr.mxu0 0.0
    %1475 = vmatpush2.msra.mxu0 0.0
    %1476 = vmatprep.subr.mxu0 0.0
    %1477 = vmatpush2.msra.mxu0 0.0
    %1478 = vmatprep.subr.mxu0 0.0
    %1479 = vmatpush2.msra.mxu0 0.0
    %1480 = vmatprep.mubr.f32.mxu0 0.0
    %1481 = vmatmul.mubr.f32.gmra.mxu0 %v1405
    %v1482 = vpop.f32.mrf.mxu0
    %v1483 = vadd.f32 0.0, %v1482
    %v1484 = vpop.f32.mrf.mxu0
    %1485 = vmatprep.mubr.f32.mxu0 0.0
    %1486 = vmatmul.mubr.f32.gmra.mxu0 %v1408
    %v1487 = vpop.f32.mrf.mxu0
    %v1488 = vadd.f32 0.0, %v1487
    %v1489 = vpop.f32.mrf.mxu0
    %1490 = vmatprep.mubr.f32.mxu0 0.0
    %1491 = vmatmul.mubr.f32.gmra.mxu0 %v1411
    %v1492 = vpop.f32.mrf.mxu0
    %v1493 = vadd.f32 0.0, %v1492
    %v1494 = vpop.f32.mrf.mxu0
    %1495 = vmatprep.mubr.f32.mxu0 0.0
    %1496 = vmatmul.mubr.f32.gmra.mxu0 %v1414
    %v1497 = vpop.f32.mrf.mxu0
    %v1498 = vadd.f32 0.0, %v1497
    %v1499 = vpop.f32.mrf.mxu0
    %1500 = vdwg.mxu0
    %v1501 = vadd.f32 %v1395, %v1483
    %v1502 = vadd.f32 %v1396, %v1488
    %v1503 = vadd.f32 %v1397, %v1493
    %v1504 = vadd.f32 %v1398, %v1498
    %1505 = vrot.lane.b32.xlu0 %v812, 1
    %v1506 = vpop.permute.xlu0 %1505
    %1507 = vrot.lane.b32.xlu0 %v813, 1
    %v1508 = vpop.permute.xlu0 %1507
    %v1511 = vsel %vm1182, 0.0, %v1506
    %v1512 = vsel %vm1182, 0.0, %v1508
    %v1513 = vmul.f32 %v1511, %v837
    %v1514 = vmul.f32 %v1512, %v837
    %s1515 = scalar_lea.vmem %s7, 192
    %v1516 = vld [vmem:[%s1515] sm:$0xff]
    %v1517 = vld [vmem:[%s1515 + $0x8] sm:$0xff]
    %v1518 = vld [vmem:[%s1515 + $0x10] sm:$0xff]
    %v1519 = vld [vmem:[%s1515 + $0x18] sm:$0xff]
    %v1521 = vsel %vm863, %v1516, 0
    %v1524 = vsel %vm863, %v1517, 0
    %v1527 = vsel %vm863, %v1518, 0
    %v1530 = vsel %vm863, %v1519, 0
    %1532 = vmatprep.subr.mxu0 0.0
    %1533 = vmatpush1.msra.mxu0 0.0
    %1534 = vmatprep.subr.mxu0 0.0
    %1535 = vmatpush1.msra.mxu0 0.0
    %1536 = vmatprep.subr.mxu0 0.0
    %1537 = vmatpush1.msra.mxu0 0.0
    %1538 = vmatprep.subr.mxu0 0.0
    %1539 = vmatpush1.msra.mxu0 0.0
    %1540 = vmatprep.subr.mxu0 0.0
    %1541 = vmatpush1.msra.mxu0 0.0
    %1542 = vmatprep.subr.mxu0 0.0
    %1543 = vmatpush1.msra.mxu0 0.0
    %1544 = vmatprep.subr.mxu0 0.0
    %1545 = vmatpush1.msra.mxu0 0.0
    %1546 = vmatprep.subr.mxu0 0.0
    %1547 = vmatpush1.msra.mxu0 0.0
    %1548 = vmatprep.subr.mxu0 0.0
    %1549 = vmatpush1.msra.mxu0 0.0
    %1550 = vmatprep.subr.mxu0 0.0
    %1551 = vmatpush1.msra.mxu0 0.0
    %1552 = vmatprep.subr.mxu0 0.0
    %1553 = vmatpush1.msra.mxu0 0.0
    %1554 = vmatprep.subr.mxu0 0.0
    %1555 = vmatpush1.msra.mxu0 0.0
    %1556 = vmatprep.subr.mxu0 0.0
    %1557 = vmatpush1.msra.mxu0 0.0
    %1558 = vmatprep.subr.mxu0 0.0
    %1559 = vmatpush1.msra.mxu0 0.0
    %1560 = vmatprep.subr.mxu0 0.0
    %1561 = vmatpush1.msra.mxu0 %v1514
    %1562 = vmatprep.subr.mxu0 0.0
    %1563 = vmatpush1.msra.mxu0 %v1513
    %1564 = vmatprep.subr.mxu0 0.0
    %1565 = vmatpush2.msra.mxu0 0.0
    %1566 = vmatprep.subr.mxu0 0.0
    %1567 = vmatpush2.msra.mxu0 0.0
    %1568 = vmatprep.subr.mxu0 0.0
    %1569 = vmatpush2.msra.mxu0 0.0
    %1570 = vmatprep.subr.mxu0 0.0
    %1571 = vmatpush2.msra.mxu0 0.0
    %1572 = vmatprep.subr.mxu0 0.0
    %1573 = vmatpush2.msra.mxu0 0.0
    %1574 = vmatprep.subr.mxu0 0.0
    %1575 = vmatpush2.msra.mxu0 0.0
    %1576 = vmatprep.subr.mxu0 0.0
    %1577 = vmatpush2.msra.mxu0 0.0
    %1578 = vmatprep.subr.mxu0 0.0
    %1579 = vmatpush2.msra.mxu0 0.0
    %1580 = vmatprep.subr.mxu0 0.0
    %1581 = vmatpush2.msra.mxu0 0.0
    %1582 = vmatprep.subr.mxu0 0.0
    %1583 = vmatpush2.msra.mxu0 0.0
    %1584 = vmatprep.subr.mxu0 0.0
    %1585 = vmatpush2.msra.mxu0 0.0
    %1586 = vmatprep.subr.mxu0 0.0
    %1587 = vmatpush2.msra.mxu0 0.0
    %1588 = vmatprep.subr.mxu0 0.0
    %1589 = vmatpush2.msra.mxu0 0.0
    %1590 = vmatprep.subr.mxu0 0.0
    %1591 = vmatpush2.msra.mxu0 0.0
    %1592 = vmatprep.subr.mxu0 0.0
    %1593 = vmatpush2.msra.mxu0 0.0
    %1594 = vmatprep.subr.mxu0 0.0
    %1595 = vmatpush2.msra.mxu0 0.0
    %1596 = vmatprep.mubr.f32.mxu0 0.0
    %1597 = vmatmul.mubr.f32.gmra.mxu0 %v1521
    %v1598 = vpop.f32.mrf.mxu0
    %v1599 = vadd.f32 0.0, %v1598
    %v1600 = vpop.f32.mrf.mxu0
    %1601 = vmatprep.mubr.f32.mxu0 0.0
    %1602 = vmatmul.mubr.f32.gmra.mxu0 %v1524
    %v1603 = vpop.f32.mrf.mxu0
    %v1604 = vadd.f32 0.0, %v1603
    %v1605 = vpop.f32.mrf.mxu0
    %1606 = vmatprep.mubr.f32.mxu0 0.0
    %1607 = vmatmul.mubr.f32.gmra.mxu0 %v1527
    %v1608 = vpop.f32.mrf.mxu0
    %v1609 = vadd.f32 0.0, %v1608
    %v1610 = vpop.f32.mrf.mxu0
    %1611 = vmatprep.mubr.f32.mxu0 0.0
    %1612 = vmatmul.mubr.f32.gmra.mxu0 %v1530
    %v1613 = vpop.f32.mrf.mxu0
    %v1614 = vadd.f32 0.0, %v1613
    %v1615 = vpop.f32.mrf.mxu0
    %1616 = vdwg.mxu0
    %v1617 = vadd.f32 %v1501, %v1599
    %v1618 = vadd.f32 %v1502, %v1604
    %v1619 = vadd.f32 %v1503, %v1609
    %v1620 = vadd.f32 %v1504, %v1614
    %s1621 = scalar_lea.vmem %s7, 224
    %v1622 = vld [vmem:[%s1621] sm:$0xff]
    %v1623 = vld [vmem:[%s1621 + $0x8] sm:$0xff]
    %v1624 = vld [vmem:[%s1621 + $0x10] sm:$0xff]
    %v1625 = vld [vmem:[%s1621 + $0x18] sm:$0xff]
    %v1627 = vsel %vm863, %v1622, 0
    %v1630 = vsel %vm863, %v1623, 0
    %v1633 = vsel %vm863, %v1624, 0
    %v1636 = vsel %vm863, %v1625, 0
    %1638 = vmatprep.subr.mxu0 0.0
    %1639 = vmatpush1.msra.mxu0 0.0
    %1640 = vmatprep.subr.mxu0 0.0
    %1641 = vmatpush1.msra.mxu0 0.0
    %1642 = vmatprep.subr.mxu0 0.0
    %1643 = vmatpush1.msra.mxu0 0.0
    %1644 = vmatprep.subr.mxu0 0.0
    %1645 = vmatpush1.msra.mxu0 0.0
    %1646 = vmatprep.subr.mxu0 0.0
    %1647 = vmatpush1.msra.mxu0 0.0
    %1648 = vmatprep.subr.mxu0 0.0
    %1649 = vmatpush1.msra.mxu0 0.0
    %1650 = vmatprep.subr.mxu0 0.0
    %1651 = vmatpush1.msra.mxu0 0.0
    %1652 = vmatprep.subr.mxu0 0.0
    %1653 = vmatpush1.msra.mxu0 0.0
    %1654 = vmatprep.subr.mxu0 0.0
    %1655 = vmatpush1.msra.mxu0 0.0
    %1656 = vmatprep.subr.mxu0 0.0
    %1657 = vmatpush1.msra.mxu0 0.0
    %1658 = vmatprep.subr.mxu0 0.0
    %1659 = vmatpush1.msra.mxu0 0.0
    %1660 = vmatprep.subr.mxu0 0.0
    %1661 = vmatpush1.msra.mxu0 0.0
    %1662 = vmatprep.subr.mxu0 0.0
    %1663 = vmatpush1.msra.mxu0 0.0
    %1664 = vmatprep.subr.mxu0 0.0
    %1665 = vmatpush1.msra.mxu0 0.0
    %1666 = vmatprep.subr.mxu0 0.0
    %1667 = vmatpush1.msra.mxu0 %v635
    %1668 = vmatprep.subr.mxu0 0.0
    %1669 = vmatpush1.msra.mxu0 %v634
    %1670 = vmatprep.subr.mxu0 0.0
    %1671 = vmatpush2.msra.mxu0 0.0
    %1672 = vmatprep.subr.mxu0 0.0
    %1673 = vmatpush2.msra.mxu0 0.0
    %1674 = vmatprep.subr.mxu0 0.0
    %1675 = vmatpush2.msra.mxu0 0.0
    %1676 = vmatprep.subr.mxu0 0.0
    %1677 = vmatpush2.msra.mxu0 0.0
    %1678 = vmatprep.subr.mxu0 0.0
    %1679 = vmatpush2.msra.mxu0 0.0
    %1680 = vmatprep.subr.mxu0 0.0
    %1681 = vmatpush2.msra.mxu0 0.0
    %1682 = vmatprep.subr.mxu0 0.0
    %1683 = vmatpush2.msra.mxu0 0.0
    %1684 = vmatprep.subr.mxu0 0.0
    %1685 = vmatpush2.msra.mxu0 0.0
    %1686 = vmatprep.subr.mxu0 0.0
    %1687 = vmatpush2.msra.mxu0 0.0
    %1688 = vmatprep.subr.mxu0 0.0
    %1689 = vmatpush2.msra.mxu0 0.0
    %1690 = vmatprep.subr.mxu0 0.0
    %1691 = vmatpush2.msra.mxu0 0.0
    %1692 = vmatprep.subr.mxu0 0.0
    %1693 = vmatpush2.msra.mxu0 0.0
    %1694 = vmatprep.subr.mxu0 0.0
    %1695 = vmatpush2.msra.mxu0 0.0
    %1696 = vmatprep.subr.mxu0 0.0
    %1697 = vmatpush2.msra.mxu0 0.0
    %1698 = vmatprep.subr.mxu0 0.0
    %1699 = vmatpush2.msra.mxu0 0.0
    %1700 = vmatprep.subr.mxu0 0.0
    %1701 = vmatpush2.msra.mxu0 0.0
    %1702 = vmatprep.mubr.f32.mxu0 0.0
    %1703 = vmatmul.mubr.f32.gmra.mxu0 %v1627
    %v1704 = vpop.f32.mrf.mxu0
    %v1705 = vadd.f32 0.0, %v1704
    %v1706 = vpop.f32.mrf.mxu0
    %1707 = vmatprep.mubr.f32.mxu0 0.0
    %1708 = vmatmul.mubr.f32.gmra.mxu0 %v1630
    %v1709 = vpop.f32.mrf.mxu0
    %v1710 = vadd.f32 0.0, %v1709
    %v1711 = vpop.f32.mrf.mxu0
    %1712 = vmatprep.mubr.f32.mxu0 0.0
    %1713 = vmatmul.mubr.f32.gmra.mxu0 %v1633
    %v1714 = vpop.f32.mrf.mxu0
    %v1715 = vadd.f32 0.0, %v1714
    %v1716 = vpop.f32.mrf.mxu0
    %1717 = vmatprep.mubr.f32.mxu0 0.0
    %1718 = vmatmul.mubr.f32.gmra.mxu0 %v1636
    %v1719 = vpop.f32.mrf.mxu0
    %v1720 = vadd.f32 0.0, %v1719
    %v1721 = vpop.f32.mrf.mxu0
    %1722 = vdwg.mxu0
    %v1723 = vadd.f32 %v1617, %v1705
    %v1724 = vadd.f32 %v1618, %v1710
    %v1725 = vadd.f32 %v1619, %v1715
    %v1726 = vadd.f32 %v1620, %v1720
    %s1727 = scalar_lea.vmem %s7, 256
    %v1728 = vld [vmem:[%s1727] sm:$0xff]
    %v1729 = vld [vmem:[%s1727 + $0x8] sm:$0xff]
    %v1730 = vld [vmem:[%s1727 + $0x10] sm:$0xff]
    %v1731 = vld [vmem:[%s1727 + $0x18] sm:$0xff]
    %v1733 = vsel %vm863, %v1728, 0
    %v1736 = vsel %vm863, %v1729, 0
    %v1739 = vsel %vm863, %v1730, 0
    %v1742 = vsel %vm863, %v1731, 0
    %1744 = vmatprep.subr.mxu0 0.0
    %1745 = vmatpush1.msra.mxu0 0.0
    %1746 = vmatprep.subr.mxu0 0.0
    %1747 = vmatpush1.msra.mxu0 0.0
    %1748 = vmatprep.subr.mxu0 0.0
    %1749 = vmatpush1.msra.mxu0 0.0
    %1750 = vmatprep.subr.mxu0 0.0
    %1751 = vmatpush1.msra.mxu0 0.0
    %1752 = vmatprep.subr.mxu0 0.0
    %1753 = vmatpush1.msra.mxu0 0.0
    %1754 = vmatprep.subr.mxu0 0.0
    %1755 = vmatpush1.msra.mxu0 0.0
    %1756 = vmatprep.subr.mxu0 0.0
    %1757 = vmatpush1.msra.mxu0 0.0
    %1758 = vmatprep.subr.mxu0 0.0
    %1759 = vmatpush1.msra.mxu0 0.0
    %1760 = vmatprep.subr.mxu0 0.0
    %1761 = vmatpush1.msra.mxu0 0.0
    %1762 = vmatprep.subr.mxu0 0.0
    %1763 = vmatpush1.msra.mxu0 0.0
    %1764 = vmatprep.subr.mxu0 0.0
    %1765 = vmatpush1.msra.mxu0 0.0
    %1766 = vmatprep.subr.mxu0 0.0
    %1767 = vmatpush1.msra.mxu0 0.0
    %1768 = vmatprep.subr.mxu0 0.0
    %1769 = vmatpush1.msra.mxu0 0.0
    %1770 = vmatprep.subr.mxu0 0.0
    %1771 = vmatpush1.msra.mxu0 0.0
    %1772 = vmatprep.subr.mxu0 0.0
    %1773 = vmatpush1.msra.mxu0 %v813
    %1774 = vmatprep.subr.mxu0 0.0
    %1775 = vmatpush1.msra.mxu0 %v812
    %1776 = vmatprep.subr.mxu0 0.0
    %1777 = vmatpush2.msra.mxu0 0.0
    %1778 = vmatprep.subr.mxu0 0.0
    %1779 = vmatpush2.msra.mxu0 0.0
    %1780 = vmatprep.subr.mxu0 0.0
    %1781 = vmatpush2.msra.mxu0 0.0
    %1782 = vmatprep.subr.mxu0 0.0
    %1783 = vmatpush2.msra.mxu0 0.0
    %1784 = vmatprep.subr.mxu0 0.0
    %1785 = vmatpush2.msra.mxu0 0.0
    %1786 = vmatprep.subr.mxu0 0.0
    %1787 = vmatpush2.msra.mxu0 0.0
    %1788 = vmatprep.subr.mxu0 0.0
    %1789 = vmatpush2.msra.mxu0 0.0
    %1790 = vmatprep.subr.mxu0 0.0
    %1791 = vmatpush2.msra.mxu0 0.0
    %1792 = vmatprep.subr.mxu0 0.0
    %1793 = vmatpush2.msra.mxu0 0.0
    %1794 = vmatprep.subr.mxu0 0.0
    %1795 = vmatpush2.msra.mxu0 0.0
    %1796 = vmatprep.subr.mxu0 0.0
    %1797 = vmatpush2.msra.mxu0 0.0
    %1798 = vmatprep.subr.mxu0 0.0
    %1799 = vmatpush2.msra.mxu0 0.0
    %1800 = vmatprep.subr.mxu0 0.0
    %1801 = vmatpush2.msra.mxu0 0.0
    %1802 = vmatprep.subr.mxu0 0.0
    %1803 = vmatpush2.msra.mxu0 0.0
    %1804 = vmatprep.subr.mxu0 0.0
    %1805 = vmatpush2.msra.mxu0 0.0
    %1806 = vmatprep.subr.mxu0 0.0
    %1807 = vmatpush2.msra.mxu0 0.0
    %1808 = vmatprep.mubr.f32.mxu0 0.0
    %1809 = vmatmul.mubr.f32.gmra.mxu0 %v1733
    %v1810 = vpop.f32.mrf.mxu0
    %v1811 = vadd.f32 0.0, %v1810
    %v1812 = vpop.f32.mrf.mxu0
    %1813 = vmatprep.mubr.f32.mxu0 0.0
    %1814 = vmatmul.mubr.f32.gmra.mxu0 %v1736
    %v1815 = vpop.f32.mrf.mxu0
    %v1816 = vadd.f32 0.0, %v1815
    %v1817 = vpop.f32.mrf.mxu0
    %1818 = vmatprep.mubr.f32.mxu0 0.0
    %1819 = vmatmul.mubr.f32.gmra.mxu0 %v1739
    %v1820 = vpop.f32.mrf.mxu0
    %v1821 = vadd.f32 0.0, %v1820
    %v1822 = vpop.f32.mrf.mxu0
    %1823 = vmatprep.mubr.f32.mxu0 0.0
    %1824 = vmatmul.mubr.f32.gmra.mxu0 %v1742
    %v1825 = vpop.f32.mrf.mxu0
    %v1826 = vadd.f32 0.0, %v1825
    %v1827 = vpop.f32.mrf.mxu0
    %1828 = vdwg.mxu0
    %v1829 = vadd.f32 %v1723, %v1811
    %v1830 = vadd.f32 %v1724, %v1816
    %v1831 = vadd.f32 %v1725, %v1821
    %v1832 = vadd.f32 %v1726, %v1826
    %v1833 = vld [vmem:[%s8] sm:$0xff]
    %v1834 = vld [vmem:[%s8 + $0x8] sm:$0xff]
    %v1835 = vld [vmem:[%s8 + $0x10] sm:$0xff]
    %v1836 = vld [vmem:[%s8 + $0x18] sm:$0xff]
    %1838 = vset.pattern.permute.xlu0 0
    %1839 = vperm.xlu0 %1838, %v1833
    %v1840 = vpop.permute.xlu0 %1839
    %1843 = vset.pattern.permute.xlu0 0
    %1844 = vperm.xlu0 %1843, %v1834
    %v1845 = vpop.permute.xlu0 %1844
    %1848 = vset.pattern.permute.xlu0 0
    %1849 = vperm.xlu0 %1848, %v1835
    %v1850 = vpop.permute.xlu0 %1849
    %1853 = vset.pattern.permute.xlu0 0
    %1854 = vperm.xlu0 %1853, %v1836
    %v1855 = vpop.permute.xlu0 %1854
    %v1857 = vadd.f32 %v1829, %v1840
    %v1858 = vadd.f32 %v1830, %v1845
    %v1859 = vadd.f32 %v1831, %v1850
    %v1860 = vadd.f32 %v1832, %v1855
    %v1861 = vmax.f32 %v1857, 0.0
    %v1862 = vmax.f32 %v1858, 0.0
    %v1863 = vmax.f32 %v1859, 0.0
    %v1864 = vmax.f32 %v1860, 0.0
    %v1865 = vld [vmem:[%s9] sm:$0xff]
    %v1866 = vld [vmem:[%s9 + $0x8] sm:$0xff]
    %v1867 = vld [vmem:[%s9 + $0x10] sm:$0xff]
    %v1868 = vld [vmem:[%s9 + $0x18] sm:$0xff]
    %v1869 = vld [vmem:[%s10] sm:$0xff]
    %v1870 = vld [vmem:[%s10 + $0x8] sm:$0xff]
    %v1871 = vld [vmem:[%s10 + $0x10] sm:$0xff]
    %v1872 = vld [vmem:[%s10 + $0x18] sm:$0xff]
    %v1874 = vsel %vm196, %v1869, 0
    %v1877 = vsel %vm196, %v1870, 0
    %v1880 = vsel %vm196, %v1871, 0
    %v1883 = vsel %vm196, %v1872, 0
    %1885 = vmatprep.subr.mxu0 0.0
    %1886 = vmatpush1.msra.mxu0 0.0
    %1887 = vmatprep.subr.mxu0 0.0
    %1888 = vmatpush1.msra.mxu0 0.0
    %1889 = vmatprep.subr.mxu0 0.0
    %1890 = vmatpush1.msra.mxu0 0.0
    %1891 = vmatprep.subr.mxu0 0.0
    %1892 = vmatpush1.msra.mxu0 0.0
    %1893 = vmatprep.subr.mxu0 0.0
    %1894 = vmatpush1.msra.mxu0 0.0
    %1895 = vmatprep.subr.mxu0 0.0
    %1896 = vmatpush1.msra.mxu0 0.0
    %1897 = vmatprep.subr.mxu0 0.0
    %1898 = vmatpush1.msra.mxu0 0.0
    %1899 = vmatprep.subr.mxu0 0.0
    %1900 = vmatpush1.msra.mxu0 0.0
    %1901 = vmatprep.subr.mxu0 0.0
    %1902 = vmatpush1.msra.mxu0 0.0
    %1903 = vmatprep.subr.mxu0 0.0
    %1904 = vmatpush1.msra.mxu0 0.0
    %1905 = vmatprep.subr.mxu0 0.0
    %1906 = vmatpush1.msra.mxu0 0.0
    %1907 = vmatprep.subr.mxu0 0.0
    %1908 = vmatpush1.msra.mxu0 0.0
    %1909 = vmatprep.subr.mxu0 0.0
    %1910 = vmatpush1.msra.mxu0 %v1864
    %1911 = vmatprep.subr.mxu0 0.0
    %1912 = vmatpush1.msra.mxu0 %v1863
    %1913 = vmatprep.subr.mxu0 0.0
    %1914 = vmatpush1.msra.mxu0 %v1862
    %1915 = vmatprep.subr.mxu0 0.0
    %1916 = vmatpush1.msra.mxu0 %v1861
    %1917 = vmatprep.subr.mxu0 0.0
    %1918 = vmatpush2.msra.mxu0 0.0
    %1919 = vmatprep.subr.mxu0 0.0
    %1920 = vmatpush2.msra.mxu0 0.0
    %1921 = vmatprep.subr.mxu0 0.0
    %1922 = vmatpush2.msra.mxu0 0.0
    %1923 = vmatprep.subr.mxu0 0.0
    %1924 = vmatpush2.msra.mxu0 0.0
    %1925 = vmatprep.subr.mxu0 0.0
    %1926 = vmatpush2.msra.mxu0 0.0
    %1927 = vmatprep.subr.mxu0 0.0
    %1928 = vmatpush2.msra.mxu0 0.0
    %1929 = vmatprep.subr.mxu0 0.0
    %1930 = vmatpush2.msra.mxu0 0.0
    %1931 = vmatprep.subr.mxu0 0.0
    %1932 = vmatpush2.msra.mxu0 0.0
    %1933 = vmatprep.subr.mxu0 0.0
    %1934 = vmatpush2.msra.mxu0 0.0
    %1935 = vmatprep.subr.mxu0 0.0
    %1936 = vmatpush2.msra.mxu0 0.0
    %1937 = vmatprep.subr.mxu0 0.0
    %1938 = vmatpush2.msra.mxu0 0.0
    %1939 = vmatprep.subr.mxu0 0.0
    %1940 = vmatpush2.msra.mxu0 0.0
    %1941 = vmatprep.subr.mxu0 0.0
    %1942 = vmatpush2.msra.mxu0 0.0
    %1943 = vmatprep.subr.mxu0 0.0
    %1944 = vmatpush2.msra.mxu0 0.0
    %1945 = vmatprep.subr.mxu0 0.0
    %1946 = vmatpush2.msra.mxu0 0.0
    %1947 = vmatprep.subr.mxu0 0.0
    %1948 = vmatpush2.msra.mxu0 0.0
    %1949 = vmatprep.mubr.f32.mxu0 0.0
    %1950 = vmatmul.mubr.f32.gmra.mxu0 %v1874
    %v1951 = vpop.f32.mrf.mxu0
    %v1952 = vadd.f32 0.0, %v1951
    %v1953 = vpop.f32.mrf.mxu0
    %1954 = vmatprep.mubr.f32.mxu0 0.0
    %1955 = vmatmul.mubr.f32.gmra.mxu0 %v1877
    %v1956 = vpop.f32.mrf.mxu0
    %v1957 = vadd.f32 0.0, %v1956
    %v1958 = vpop.f32.mrf.mxu0
    %1959 = vmatprep.mubr.f32.mxu0 0.0
    %1960 = vmatmul.mubr.f32.gmra.mxu0 %v1880
    %v1961 = vpop.f32.mrf.mxu0
    %v1962 = vadd.f32 0.0, %v1961
    %v1963 = vpop.f32.mrf.mxu0
    %1964 = vmatprep.mubr.f32.mxu0 0.0
    %1965 = vmatmul.mubr.f32.gmra.mxu0 %v1883
    %v1966 = vpop.f32.mrf.mxu0
    %v1967 = vadd.f32 0.0, %v1966
    %v1968 = vpop.f32.mrf.mxu0
    %1969 = vdwg.mxu0
    %v1971 = vsel %vm196, %v1865, 0
    %v1974 = vsel %vm196, %v1866, 0
    %v1977 = vsel %vm196, %v1867, 0
    %v1980 = vsel %vm196, %v1868, 0
    %1982 = vmatprep.subr.mxu0 0.0
    %1983 = vmatpush1.msra.mxu0 0.0
    %1984 = vmatprep.subr.mxu0 0.0
    %1985 = vmatpush1.msra.mxu0 0.0
    %1986 = vmatprep.subr.mxu0 0.0
    %1987 = vmatpush1.msra.mxu0 0.0
    %1988 = vmatprep.subr.mxu0 0.0
    %1989 = vmatpush1.msra.mxu0 0.0
    %1990 = vmatprep.subr.mxu0 0.0
    %1991 = vmatpush1.msra.mxu0 0.0
    %1992 = vmatprep.subr.mxu0 0.0
    %1993 = vmatpush1.msra.mxu0 0.0
    %1994 = vmatprep.subr.mxu0 0.0
    %1995 = vmatpush1.msra.mxu0 0.0
    %1996 = vmatprep.subr.mxu0 0.0
    %1997 = vmatpush1.msra.mxu0 0.0
    %1998 = vmatprep.subr.mxu0 0.0
    %1999 = vmatpush1.msra.mxu0 0.0
    %2000 = vmatprep.subr.mxu0 0.0
    %2001 = vmatpush1.msra.mxu0 0.0
    %2002 = vmatprep.subr.mxu0 0.0
    %2003 = vmatpush1.msra.mxu0 0.0
    %2004 = vmatprep.subr.mxu0 0.0
    %2005 = vmatpush1.msra.mxu0 0.0
    %2006 = vmatprep.subr.mxu0 0.0
    %2007 = vmatpush1.msra.mxu0 %v736
    %2008 = vmatprep.subr.mxu0 0.0
    %2009 = vmatpush1.msra.mxu0 %v735
    %2010 = vmatprep.subr.mxu0 0.0
    %2011 = vmatpush1.msra.mxu0 %v734
    %2012 = vmatprep.subr.mxu0 0.0
    %2013 = vmatpush1.msra.mxu0 %v733
    %2014 = vmatprep.subr.mxu0 0.0
    %2015 = vmatpush2.msra.mxu0 0.0
    %2016 = vmatprep.subr.mxu0 0.0
    %2017 = vmatpush2.msra.mxu0 0.0
    %2018 = vmatprep.subr.mxu0 0.0
    %2019 = vmatpush2.msra.mxu0 0.0
    %2020 = vmatprep.subr.mxu0 0.0
    %2021 = vmatpush2.msra.mxu0 0.0
    %2022 = vmatprep.subr.mxu0 0.0
    %2023 = vmatpush2.msra.mxu0 0.0
    %2024 = vmatprep.subr.mxu0 0.0
    %2025 = vmatpush2.msra.mxu0 0.0
    %2026 = vmatprep.subr.mxu0 0.0
    %2027 = vmatpush2.msra.mxu0 0.0
    %2028 = vmatprep.subr.mxu0 0.0
    %2029 = vmatpush2.msra.mxu0 0.0
    %2030 = vmatprep.subr.mxu0 0.0
    %2031 = vmatpush2.msra.mxu0 0.0
    %2032 = vmatprep.subr.mxu0 0.0
    %2033 = vmatpush2.msra.mxu0 0.0
    %2034 = vmatprep.subr.mxu0 0.0
    %2035 = vmatpush2.msra.mxu0 0.0
    %2036 = vmatprep.subr.mxu0 0.0
    %2037 = vmatpush2.msra.mxu0 0.0
    %2038 = vmatprep.subr.mxu0 0.0
    %2039 = vmatpush2.msra.mxu0 0.0
    %2040 = vmatprep.subr.mxu0 0.0
    %2041 = vmatpush2.msra.mxu0 0.0
    %2042 = vmatprep.subr.mxu0 0.0
    %2043 = vmatpush2.msra.mxu0 0.0
    %2044 = vmatprep.subr.mxu0 0.0
    %2045 = vmatpush2.msra.mxu0 0.0
    %2046 = vmatprep.mubr.f32.mxu0 0.0
    %2047 = vmatmul.mubr.f32.gmra.mxu0 %v1971
    %v2048 = vpop.f32.mrf.mxu0
    %v2049 = vadd.f32 %v1952, %v2048
    %v2050 = vpop.f32.mrf.mxu0
    %2051 = vmatprep.mubr.f32.mxu0 0.0
    %2052 = vmatmul.mubr.f32.gmra.mxu0 %v1974
    %v2053 = vpop.f32.mrf.mxu0
    %v2054 = vadd.f32 %v1957, %v2053
    %v2055 = vpop.f32.mrf.mxu0
    %2056 = vmatprep.mubr.f32.mxu0 0.0
    %2057 = vmatmul.mubr.f32.gmra.mxu0 %v1977
    %v2058 = vpop.f32.mrf.mxu0
    %v2059 = vadd.f32 %v1962, %v2058
    %v2060 = vpop.f32.mrf.mxu0
    %2061 = vmatprep.mubr.f32.mxu0 0.0
    %2062 = vmatmul.mubr.f32.gmra.mxu0 %v1980
    %v2063 = vpop.f32.mrf.mxu0
    %v2064 = vadd.f32 %v1967, %v2063
    %v2065 = vpop.f32.mrf.mxu0
    %2066 = vdwg.mxu0
    %v2067 = vld [vmem:[%s11] sm:$0xff]
    %v2068 = vld [vmem:[%s11 + $0x8] sm:$0xff]
    %v2069 = vld [vmem:[%s11 + $0x10] sm:$0xff]
    %v2070 = vld [vmem:[%s11 + $0x18] sm:$0xff]
    %2072 = vset.pattern.permute.xlu0 0
    %2073 = vperm.xlu0 %2072, %v2067
    %v2074 = vpop.permute.xlu0 %2073
    %2077 = vset.pattern.permute.xlu0 0
    %2078 = vperm.xlu0 %2077, %v2068
    %v2079 = vpop.permute.xlu0 %2078
    %2082 = vset.pattern.permute.xlu0 0
    %2083 = vperm.xlu0 %2082, %v2069
    %v2084 = vpop.permute.xlu0 %2083
    %2087 = vset.pattern.permute.xlu0 0
    %2088 = vperm.xlu0 %2087, %v2070
    %v2089 = vpop.permute.xlu0 %2088
    %v2091 = vadd.f32 %v2049, %v2074
    %v2092 = vadd.f32 %v2054, %v2079
    %v2093 = vadd.f32 %v2059, %v2084
    %v2094 = vadd.f32 %v2064, %v2089
    %v2095 = vmax.f32 %v2091, 0.0
    %v2096 = vmax.f32 %v2092, 0.0
    %v2097 = vmax.f32 %v2093, 0.0
    %v2098 = vmax.f32 %v2094, 0.0
    %2099 = vst [vmem:[#allocation2] sm:$0xff] %v2095
    %2100 = vst [vmem:[#allocation2 + $0x8] sm:$0xff] %v2096
    %2101 = vst [vmem:[#allocation2 + $0x10] sm:$0xff] %v2097
    %2102 = vst [vmem:[#allocation2 + $0x18] sm:$0xff] %v2098
    // Predicated region
    $region50: #{tpu_custom_call.1} parent=1 // pred_check
      _
    $region51: #{tpu_custom_call.1} parent=1 // pred_check_branch
      %2104 = sbr.rel (0) target = $region53
    $region52: #{tpu_custom_call.1} parent=1 // pred_region
      %s2106 = ssub.s32 512, 512
      %2107 = vsyncadd [#allocation3], %s2106
      %s2108 = sshll.u32 [#allocation2], 4
      %s2109 = int_to_ptr.vmem [resolvable:$true] %s2108
      %2114 = dma.vmem_to_hbm [thread:$0]  %s2109, 512, %s12, [#allocation3], 128, 128, 8
    $region53: #{tpu_custom_call.1} parent=1 // pred_fallthru
      _
    // Predicated region
    $region54: #{tpu_custom_call.1} parent=1 // pred_check
      _
    $region55: #{tpu_custom_call.1} parent=1 // pred_check_branch
      %2116 = sbr.rel (0) target = $region57
    $region56: #{tpu_custom_call.1} parent=1 // pred_region
      %2117 = dma.done [#allocation3], 512
    $region57: #{tpu_custom_call.1} parent=1 // pred_fallthru
      _
    %2118 = vsyncpa [#allocation3], 1

</llo_original>
